<compile_context>
chip_gen: v7x
topology: tpu7x:2x2x1
jax: 0.10.0
libtpu: 0.0.40
codegen_flags: <defaults>
</compile_context>

<pallas_src>
import functools

import jax
import jax.numpy as jnp
from jax.experimental import pallas as pl
from jax.experimental.pallas import tpu as pltpu


def _round_up(n, m):
    return ((n + m - 1) // m) * m


def _rnn_kernel(num_layers, seq_len, batch_pad, unroll, compute_dtype, *refs):
    """Single invocation; whole padded, time-major sequence resident in VMEM.

    refs = (x, [w_ih_l, w_hh_l, b_l] * L, fc_w, fc_b, out, seq_buf0[, seq_buf1])
      x      : (T*B_pad, D_pad)   time-major, flattened, compute_dtype
      w_ih_l : (in_pad_l, H_pad)  compute_dtype    w_hh_l : (H_pad, H_pad) compute_dtype
      b_l    : (1, H_pad) f32     (b_ih + b_hh combined)
      fc_w   : (H_pad, O_pad) compute_dtype,  fc_b : (1, O_pad) f32
      out    : (B_pad, O_pad) f32
      seq_buf: (T*B_pad, H_pad) f32 VMEM scratch (ping-pong between layers)
    """
    n_bufs = 2 if num_layers > 1 else 1
    x_ref = refs[0]
    fc_w_ref = refs[1 + 3 * num_layers]
    fc_b_ref = refs[2 + 3 * num_layers]
    out_ref = refs[3 + 3 * num_layers]
    seq_bufs = refs[4 + 3 * num_layers:]
    assert len(seq_bufs) == n_bufs

    h_pad = fc_w_ref.shape[0]
    cdt = compute_dtype

    src = x_ref
    h_last = None
    for l in range(num_layers):
        w_ih_ref = refs[1 + 3 * l]
        w_hh_ref = refs[2 + 3 * l]
        b_ref = refs[3 + 3 * l]
        dst = seq_bufs[l % n_bufs]

        # (1) Batched input projection for ALL timesteps: one tall MXU-efficient GEMM.
        #     (Bias broadcast happens once per layer, not once per step.)
        pre = jnp.dot(src[...].astype(cdt), w_ih_ref[...],
                      preferred_element_type=jnp.float32) + b_ref[...]
        dst[...] = pre

        # (2) Serial recurrence: only h @ W_hh + tanh remains on the critical path.
        #     Hidden state is carried in registers; W_hh is read at the dot site
        #     (VMEM-resident, MXU streams it) instead of being hoisted.
        write_back = l < num_layers - 1  # last layer's per-step outputs are never re-read

        def step(t, h, _dst=dst, _w_hh_ref=w_hh_ref, _write_back=write_back):
            row = pl.multiple_of(t * batch_pad, batch_pad)
            pre_t = _dst[pl.ds(row, batch_pad), :]                      # (B_pad, H_pad) f32
            h_new = jnp.tanh(
                pre_t + jnp.dot(h.astype(cdt), _w_hh_ref[...],
                                preferred_element_type=jnp.float32))
            if _write_back:
                _dst[pl.ds(row, batch_pad), :] = h_new                  # layer-(l+1) input
            return h_new

        h0 = jnp.zeros((batch_pad, h_pad), jnp.float32)
        h_last = jax.lax.fori_loop(0, seq_len, step, h0, unroll=unroll)
        src = dst

    # Final Linear on the last layer's hidden state at the last timestep.
    out_ref[...] = (jnp.dot(h_last.astype(cdt), fc_w_ref[...],
                            preferred_element_type=jnp.float32)
                    + fc_b_ref[...]).astype(out_ref.dtype)


def simple_rnn_forward(x, params, *, num_layers, compute_dtype=jnp.bfloat16):
    """x: (B, T, D) float32. params: dict of weights stored as (in_features, out_features).

    compute_dtype controls the MXU operand dtype (weights / activations feeding matmuls);
    accumulation, bias adds and tanh are always f32.
    """
    B, T, D = x.shape
    H = params["w_hh"][0].shape[0]
    O = params["fc_w"].shape[1]

    # Hardware-tile padding: 8 sublanes (batch), 128 lanes (feature dims).
    B_pad = _round_up(max(B, 8), 8)
    D_pad = _round_up(D, 128)
    H_pad = _round_up(H, 128)
    O_pad = _round_up(O, 128)
    cdt = compute_dtype

    # Time-major + pad + flatten so layer 0's projection is one tall GEMM and recurrence
    # step t addresses the aligned row block [t*B_pad, (t+1)*B_pad).
    # TODO(synk): skip this host-side pad (pass x via pl.ANY, pad in VMEM) for long T.
    x_tm = jnp.transpose(x, (1, 0, 2)).astype(cdt)
    x_pad = jnp.zeros((T, B_pad, D_pad), cdt).at[:, :B, :D].set(x_tm)
    x_pad = x_pad.reshape(T * B_pad, D_pad)

    # Zero-padded weights keep pad lanes of the hidden state exactly zero -> exact result.
    inputs = [x_pad]
    for l in range(num_layers):
        in_dim = D if l == 0 else H
        in_pad = D_pad if l == 0 else H_pad
        w_ih = jnp.zeros((in_pad, H_pad), cdt).at[:in_dim, :H].set(
            params["w_ih"][l].astype(cdt))
        w_hh = jnp.zeros((H_pad, H_pad), cdt).at[:H, :H].set(
            params["w_hh"][l].astype(cdt))
        b = jnp.zeros((1, H_pad), jnp.float32).at[:, :H].set(
            (params["b_ih"][l] + params["b_hh"][l]).astype(jnp.float32))
        inputs += [w_ih, w_hh, b]
    fc_w = jnp.zeros((H_pad, O_pad), cdt).at[:H, :O].set(params["fc_w"].astype(cdt))
    fc_b = jnp.zeros((1, O_pad), jnp.float32).at[:, :O].set(
        params["fc_b"].astype(jnp.float32))
    inputs += [fc_w, fc_b]

    # Ping-pong scratch: layer l writes its projections / outputs into buf[l % 2].
    n_bufs = 2 if num_layers > 1 else 1
    seq_bytes = T * B_pad * H_pad * 4
    in_bytes = sum(int(a.size) * a.dtype.itemsize for a in inputs)
    out_bytes = B_pad * O_pad * 4
    footprint = in_bytes + out_bytes + n_bufs * seq_bytes
    # Raise the scoped-VMEM budget above defaults (16/32 MiB), stay under v7x physical.
    vmem_limit = int(min(max(2 * footprint + (4 << 20), 32 << 20), 60 << 20))

    # Partial unroll keeps scheduler visibility without exploding register pressure.
    unroll = int(T) if T <= 8 else 8

    vmem_spec = pl.BlockSpec(memory_space=pltpu.MemorySpace.VMEM)
    out_pad = pl.pallas_call(
        functools.partial(_rnn_kernel, num_layers, T, B_pad, unroll, cdt),
        out_shape=jax.ShapeDtypeStruct((B_pad, O_pad), jnp.float32),
        in_specs=[vmem_spec] * len(inputs),
        out_specs=vmem_spec,
        scratch_shapes=[pltpu.VMEM((T * B_pad, H_pad), jnp.float32)
                        for _ in range(n_bufs)],
        compiler_params=pltpu.CompilerParams(vmem_limit_bytes=vmem_limit),
    )(*inputs)

    return out_pad[:B, :O]


def init_params(key, input_size, hidden_size, num_layers, output_size):
    """Deterministic init (uniform, PyTorch-like scale). Weights stored as (in, out)."""
    k = 1.0 / jnp.sqrt(hidden_size)
    keys = jax.random.split(key, 4 * num_layers + 2)
    w_ih, w_hh, b_ih, b_hh = [], [], [], []
    for l in range(num_layers):
        in_dim = input_size if l == 0 else hidden_size
        w_ih.append(jax.random.uniform(keys[4 * l + 0], (in_dim, hidden_size),
                                       jnp.float32, -k, k))
        w_hh.append(jax.random.uniform(keys[4 * l + 1], (hidden_size, hidden_size),
                                       jnp.float32, -k, k))
        b_ih.append(jax.random.uniform(keys[4 * l + 2], (1, hidden_size),
                                       jnp.float32, -k, k))
        b_hh.append(jax.random.uniform(keys[4 * l + 3], (1, hidden_size),
                                       jnp.float32, -k, k))
    fc_w = jax.random.uniform(keys[-2], (hidden_size, output_size),
                              jnp.float32, -k, k)
    fc_b = jax.random.uniform(keys[-1], (1, output_size), jnp.float32, -k, k)
    return dict(w_ih=w_ih, w_hh=w_hh, b_ih=b_ih, b_hh=b_hh, fc_w=fc_w, fc_b=fc_b)


def reference_forward(x, params, *, num_layers):
    """Pure-JAX reference matching the PyTorch forward (squeeze() is a no-op for B > 1)."""
    B, T, D = x.shape
    H = params["w_hh"][0].shape[0]
    hidden = [jnp.zeros((B, H), jnp.float32) for _ in range(num_layers)]
    last = None
    for t in range(T):
        for l in range(num_layers):
            inp = x[:, t, :] if l == 0 else hidden[l - 1]
            pre = (inp @ params["w_ih"][l] + params["b_ih"][l]
                   + hidden[l] @ params["w_hh"][l] + params["b_hh"][l])
            hidden[l] = jnp.tanh(pre)
            last = hidden[l]
    out = jnp.squeeze(last)
    return out @ params["fc_w"] + params["fc_b"]


if __name__ == "__main__":
    B, T = 2, 8
    input_size, hidden_size, num_layers, output_size = 4, 32, 2, 8

    key = jax.random.PRNGKey(0)
    kx, kp = jax.random.split(key)
    x = jax.random.normal(kx, (B, T, input_size), jnp.float32)
    params = init_params(kp, input_size, hidden_size, num_layers, output_size)

    ref = reference_forward(x, params, num_layers=num_layers)

    # Exact path (f32 MXU operands): must match the reference tightly.
    out_f32 = simple_rnn_forward(x, params, num_layers=num_layers,
                                 compute_dtype=jnp.float32)
    out_f32 = jax.block_until_ready(out_f32)
    assert out_f32.shape == (B, output_size)
    assert jnp.allclose(out_f32, ref, atol=1e-5, rtol=1e-5), "f32 mismatch vs reference"

    # bf16-weight fast path (f32 accumulation + f32 tanh): loose numerical check.
    out_bf16 = simple_rnn_forward(x, params, num_layers=num_layers,
                                  compute_dtype=jnp.bfloat16)
    out_bf16 = jax.block_until_ready(out_bf16)
    assert out_bf16.shape == (B, output_size)
    assert jnp.allclose(out_bf16, ref, atol=1e-1, rtol=1e-1), "bf16 mismatch vs reference"

    print("KERNEL_OK")
</pallas_src>

<mosaic_0001>
module attributes {stable_mosaic.version = 11 : i64} {
  func.func @_rnn_kernel(%arg0: memref<64x128xf32, #tpu.memory_space<vmem>>, %arg1: memref<128x128xf32, #tpu.memory_space<vmem>>, %arg2: memref<128x128xf32, #tpu.memory_space<vmem>>, %arg3: memref<1x128xf32, #tpu.memory_space<vmem>>, %arg4: memref<128x128xf32, #tpu.memory_space<vmem>>, %arg5: memref<128x128xf32, #tpu.memory_space<vmem>>, %arg6: memref<1x128xf32, #tpu.memory_space<vmem>>, %arg7: memref<128x128xf32, #tpu.memory_space<vmem>>, %arg8: memref<1x128xf32, #tpu.memory_space<vmem>>, %arg9: memref<8x128xf32, #tpu.memory_space<vmem>>, %arg10: memref<64x128xf32, #tpu.memory_space<vmem>>, %arg11: memref<64x128xf32, #tpu.memory_space<vmem>>) attributes {dimension_semantics = [], scalar_prefetch = 0 : i64, scratch_operands = 2 : i64, tpu.core_type = #tpu.core_type<tc>} {
    %c0 = arith.constant 0 : index
    %c0_0 = arith.constant 0 : index
    %0 = vector.load %arg0[%c0, %c0_0] : memref<64x128xf32, #tpu.memory_space<vmem>>, vector<64x128xf32>
    %c0_1 = arith.constant 0 : index
    %c0_2 = arith.constant 0 : index
    %1 = vector.load %arg1[%c0_1, %c0_2] : memref<128x128xf32, #tpu.memory_space<vmem>>, vector<128x128xf32>
    %cst = arith.constant dense<0.000000e+00> : vector<64x128xf32>
    %2 = tpu.matmul %0, %1, %cst {dimension_numbers = #tpu.dot_dimension_numbers<[1], [0], [0], [1], [0, 0, 1, 1], [], []>} : vector<64x128xf32>, vector<128x128xf32>, vector<64x128xf32> -> vector<64x128xf32>
    %c0_3 = arith.constant 0 : index
    %c0_4 = arith.constant 0 : index
    %3 = vector.load %arg3[%c0_3, %c0_4] : memref<1x128xf32, #tpu.memory_space<vmem>>, vector<1x128xf32>
    %4 = vector.broadcast %3 : vector<1x128xf32> to vector<64x128xf32>
    %5 = arith.addf %2, %4 : vector<64x128xf32>
    %c0_5 = arith.constant 0 : index
    %c0_6 = arith.constant 0 : index
    %6 = vector.load %arg10[%c0_5, %c0_6] : memref<64x128xf32, #tpu.memory_space<vmem>>, vector<64x128xf32>
    tpu.vector_store %arg10[%c0_5, %c0_6], %5 {strides = array<i32>} : memref<64x128xf32, #tpu.memory_space<vmem>>, vector<64x128xf32>,
    %cst_7 = arith.constant 0.000000e+00 : f32
    %7 = vector.broadcast %cst_7 : f32 to vector<8x128xf32>
    %c0_i32 = arith.constant 0 : i32
    %c8_i32 = arith.constant 8 : i32
    %8 = arith.muli %c0_i32, %c8_i32 : i32
    %9 = tpu.assume_multiple %8, 8 : i32
    %10 = arith.index_cast %9 : i32 to index
    %c0_8 = arith.constant 0 : index
    %11 = vector.load %arg10[%10, %c0_8] : memref<64x128xf32, #tpu.memory_space<vmem>>, vector<8x128xf32>
    %c0_9 = arith.constant 0 : index
    %c0_10 = arith.constant 0 : index
    %12 = vector.load %arg2[%c0_9, %c0_10] : memref<128x128xf32, #tpu.memory_space<vmem>>, vector<128x128xf32>
    %cst_11 = arith.constant dense<0.000000e+00> : vector<8x128xf32>
    %13 = tpu.matmul %7, %12, %cst_11 {dimension_numbers = #tpu.dot_dimension_numbers<[1], [0], [0], [1], [0, 0, 1, 1], [], []>} : vector<8x128xf32>, vector<128x128xf32>, vector<8x128xf32> -> vector<8x128xf32>
    %14 = arith.addf %11, %13 : vector<8x128xf32>
    %15 = math.tanh %14 : vector<8x128xf32>
    %16 = arith.index_cast %9 : i32 to index
    %c0_12 = arith.constant 0 : index
    %17 = vector.load %arg10[%16, %c0_12] : memref<64x128xf32, #tpu.memory_space<vmem>>, vector<8x128xf32>
    tpu.vector_store %arg10[%16, %c0_12], %15 {strides = array<i32>} : memref<64x128xf32, #tpu.memory_space<vmem>>, vector<8x128xf32>,
    %c1_i32 = arith.constant 1 : i32
    %c8_i32_13 = arith.constant 8 : i32
    %18 = arith.muli %c1_i32, %c8_i32_13 : i32
    %19 = tpu.assume_multiple %18, 8 : i32
    %20 = arith.index_cast %19 : i32 to index
    %c0_14 = arith.constant 0 : index
    %21 = vector.load %arg10[%20, %c0_14] : memref<64x128xf32, #tpu.memory_space<vmem>>, vector<8x128xf32>
    %c0_15 = arith.constant 0 : index
    %c0_16 = arith.constant 0 : index
    %22 = vector.load %arg2[%c0_15, %c0_16] : memref<128x128xf32, #tpu.memory_space<vmem>>, vector<128x128xf32>
    %cst_17 = arith.constant dense<0.000000e+00> : vector<8x128xf32>
    %23 = tpu.matmul %15, %22, %cst_17 {dimension_numbers = #tpu.dot_dimension_numbers<[1], [0], [0], [1], [0, 0, 1, 1], [], []>} : vector<8x128xf32>, vector<128x128xf32>, vector<8x128xf32> -> vector<8x128xf32>
    %24 = arith.addf %21, %23 : vector<8x128xf32>
    %25 = math.tanh %24 : vector<8x128xf32>
    %26 = arith.index_cast %19 : i32 to index
    %c0_18 = arith.constant 0 : index
    %27 = vector.load %arg10[%26, %c0_18] : memref<64x128xf32, #tpu.memory_space<vmem>>, vector<8x128xf32>
    tpu.vector_store %arg10[%26, %c0_18], %25 {strides = array<i32>} : memref<64x128xf32, #tpu.memory_space<vmem>>, vector<8x128xf32>,
    %c2_i32 = arith.constant 2 : i32
    %c8_i32_19 = arith.constant 8 : i32
    %28 = arith.muli %c2_i32, %c8_i32_19 : i32
    %29 = tpu.assume_multiple %28, 8 : i32
    %30 = arith.index_cast %29 : i32 to index
    %c0_20 = arith.constant 0 : index
    %31 = vector.load %arg10[%30, %c0_20] : memref<64x128xf32, #tpu.memory_space<vmem>>, vector<8x128xf32>
    %c0_21 = arith.constant 0 : index
    %c0_22 = arith.constant 0 : index
    %32 = vector.load %arg2[%c0_21, %c0_22] : memref<128x128xf32, #tpu.memory_space<vmem>>, vector<128x128xf32>
    %cst_23 = arith.constant dense<0.000000e+00> : vector<8x128xf32>
    %33 = tpu.matmul %25, %32, %cst_23 {dimension_numbers = #tpu.dot_dimension_numbers<[1], [0], [0], [1], [0, 0, 1, 1], [], []>} : vector<8x128xf32>, vector<128x128xf32>, vector<8x128xf32> -> vector<8x128xf32>
    %34 = arith.addf %31, %33 : vector<8x128xf32>
    %35 = math.tanh %34 : vector<8x128xf32>
    %36 = arith.index_cast %29 : i32 to index
    %c0_24 = arith.constant 0 : index
    %37 = vector.load %arg10[%36, %c0_24] : memref<64x128xf32, #tpu.memory_space<vmem>>, vector<8x128xf32>
    tpu.vector_store %arg10[%36, %c0_24], %35 {strides = array<i32>} : memref<64x128xf32, #tpu.memory_space<vmem>>, vector<8x128xf32>,
    %c3_i32 = arith.constant 3 : i32
    %c8_i32_25 = arith.constant 8 : i32
    %38 = arith.muli %c3_i32, %c8_i32_25 : i32
    %39 = tpu.assume_multiple %38, 8 : i32
    %40 = arith.index_cast %39 : i32 to index
    %c0_26 = arith.constant 0 : index
    %41 = vector.load %arg10[%40, %c0_26] : memref<64x128xf32, #tpu.memory_space<vmem>>, vector<8x128xf32>
    %c0_27 = arith.constant 0 : index
    %c0_28 = arith.constant 0 : index
    %42 = vector.load %arg2[%c0_27, %c0_28] : memref<128x128xf32, #tpu.memory_space<vmem>>, vector<128x128xf32>
    %cst_29 = arith.constant dense<0.000000e+00> : vector<8x128xf32>
    %43 = tpu.matmul %35, %42, %cst_29 {dimension_numbers = #tpu.dot_dimension_numbers<[1], [0], [0], [1], [0, 0, 1, 1], [], []>} : vector<8x128xf32>, vector<128x128xf32>, vector<8x128xf32> -> vector<8x128xf32>
    %44 = arith.addf %41, %43 : vector<8x128xf32>
    %45 = math.tanh %44 : vector<8x128xf32>
    %46 = arith.index_cast %39 : i32 to index
    %c0_30 = arith.constant 0 : index
    %47 = vector.load %arg10[%46, %c0_30] : memref<64x128xf32, #tpu.memory_space<vmem>>, vector<8x128xf32>
    tpu.vector_store %arg10[%46, %c0_30], %45 {strides = array<i32>} : memref<64x128xf32, #tpu.memory_space<vmem>>, vector<8x128xf32>,
    %c4_i32 = arith.constant 4 : i32
    %c8_i32_31 = arith.constant 8 : i32
    %48 = arith.muli %c4_i32, %c8_i32_31 : i32
    %49 = tpu.assume_multiple %48, 8 : i32
    %50 = arith.index_cast %49 : i32 to index
    %c0_32 = arith.constant 0 : index
    %51 = vector.load %arg10[%50, %c0_32] : memref<64x128xf32, #tpu.memory_space<vmem>>, vector<8x128xf32>
    %c0_33 = arith.constant 0 : index
    %c0_34 = arith.constant 0 : index
    %52 = vector.load %arg2[%c0_33, %c0_34] : memref<128x128xf32, #tpu.memory_space<vmem>>, vector<128x128xf32>
    %cst_35 = arith.constant dense<0.000000e+00> : vector<8x128xf32>
    %53 = tpu.matmul %45, %52, %cst_35 {dimension_numbers = #tpu.dot_dimension_numbers<[1], [0], [0], [1], [0, 0, 1, 1], [], []>} : vector<8x128xf32>, vector<128x128xf32>, vector<8x128xf32> -> vector<8x128xf32>
    %54 = arith.addf %51, %53 : vector<8x128xf32>
    %55 = math.tanh %54 : vector<8x128xf32>
    %56 = arith.index_cast %49 : i32 to index
    %c0_36 = arith.constant 0 : index
    %57 = vector.load %arg10[%56, %c0_36] : memref<64x128xf32, #tpu.memory_space<vmem>>, vector<8x128xf32>
    tpu.vector_store %arg10[%56, %c0_36], %55 {strides = array<i32>} : memref<64x128xf32, #tpu.memory_space<vmem>>, vector<8x128xf32>,
    %c5_i32 = arith.constant 5 : i32
    %c8_i32_37 = arith.constant 8 : i32
    %58 = arith.muli %c5_i32, %c8_i32_37 : i32
    %59 = tpu.assume_multiple %58, 8 : i32
    %60 = arith.index_cast %59 : i32 to index
    %c0_38 = arith.constant 0 : index
    %61 = vector.load %arg10[%60, %c0_38] : memref<64x128xf32, #tpu.memory_space<vmem>>, vector<8x128xf32>
    %c0_39 = arith.constant 0 : index
    %c0_40 = arith.constant 0 : index
    %62 = vector.load %arg2[%c0_39, %c0_40] : memref<128x128xf32, #tpu.memory_space<vmem>>, vector<128x128xf32>
    %cst_41 = arith.constant dense<0.000000e+00> : vector<8x128xf32>
    %63 = tpu.matmul %55, %62, %cst_41 {dimension_numbers = #tpu.dot_dimension_numbers<[1], [0], [0], [1], [0, 0, 1, 1], [], []>} : vector<8x128xf32>, vector<128x128xf32>, vector<8x128xf32> -> vector<8x128xf32>
    %64 = arith.addf %61, %63 : vector<8x128xf32>
    %65 = math.tanh %64 : vector<8x128xf32>
    %66 = arith.index_cast %59 : i32 to index
    %c0_42 = arith.constant 0 : index
    %67 = vector.load %arg10[%66, %c0_42] : memref<64x128xf32, #tpu.memory_space<vmem>>, vector<8x128xf32>
    tpu.vector_store %arg10[%66, %c0_42], %65 {strides = array<i32>} : memref<64x128xf32, #tpu.memory_space<vmem>>, vector<8x128xf32>,
    %c6_i32 = arith.constant 6 : i32
    %c8_i32_43 = arith.constant 8 : i32
    %68 = arith.muli %c6_i32, %c8_i32_43 : i32
    %69 = tpu.assume_multiple %68, 8 : i32
    %70 = arith.index_cast %69 : i32 to index
    %c0_44 = arith.constant 0 : index
    %71 = vector.load %arg10[%70, %c0_44] : memref<64x128xf32, #tpu.memory_space<vmem>>, vector<8x128xf32>
    %c0_45 = arith.constant 0 : index
    %c0_46 = arith.constant 0 : index
    %72 = vector.load %arg2[%c0_45, %c0_46] : memref<128x128xf32, #tpu.memory_space<vmem>>, vector<128x128xf32>
    %cst_47 = arith.constant dense<0.000000e+00> : vector<8x128xf32>
    %73 = tpu.matmul %65, %72, %cst_47 {dimension_numbers = #tpu.dot_dimension_numbers<[1], [0], [0], [1], [0, 0, 1, 1], [], []>} : vector<8x128xf32>, vector<128x128xf32>, vector<8x128xf32> -> vector<8x128xf32>
    %74 = arith.addf %71, %73 : vector<8x128xf32>
    %75 = math.tanh %74 : vector<8x128xf32>
    %76 = arith.index_cast %69 : i32 to index
    %c0_48 = arith.constant 0 : index
    %77 = vector.load %arg10[%76, %c0_48] : memref<64x128xf32, #tpu.memory_space<vmem>>, vector<8x128xf32>
    tpu.vector_store %arg10[%76, %c0_48], %75 {strides = array<i32>} : memref<64x128xf32, #tpu.memory_space<vmem>>, vector<8x128xf32>,
    %c7_i32 = arith.constant 7 : i32
    %c8_i32_49 = arith.constant 8 : i32
    %78 = arith.muli %c7_i32, %c8_i32_49 : i32
    %79 = tpu.assume_multiple %78, 8 : i32
    %80 = arith.index_cast %79 : i32 to index
    %c0_50 = arith.constant 0 : index
    %81 = vector.load %arg10[%80, %c0_50] : memref<64x128xf32, #tpu.memory_space<vmem>>, vector<8x128xf32>
    %c0_51 = arith.constant 0 : index
    %c0_52 = arith.constant 0 : index
    %82 = vector.load %arg2[%c0_51, %c0_52] : memref<128x128xf32, #tpu.memory_space<vmem>>, vector<128x128xf32>
    %cst_53 = arith.constant dense<0.000000e+00> : vector<8x128xf32>
    %83 = tpu.matmul %75, %82, %cst_53 {dimension_numbers = #tpu.dot_dimension_numbers<[1], [0], [0], [1], [0, 0, 1, 1], [], []>} : vector<8x128xf32>, vector<128x128xf32>, vector<8x128xf32> -> vector<8x128xf32>
    %84 = arith.addf %81, %83 : vector<8x128xf32>
    %85 = math.tanh %84 : vector<8x128xf32>
    %86 = arith.index_cast %79 : i32 to index
    %c0_54 = arith.constant 0 : index
    %87 = vector.load %arg10[%86, %c0_54] : memref<64x128xf32, #tpu.memory_space<vmem>>, vector<8x128xf32>
    tpu.vector_store %arg10[%86, %c0_54], %85 {strides = array<i32>} : memref<64x128xf32, #tpu.memory_space<vmem>>, vector<8x128xf32>,
    %c8_i32_55 = arith.constant 8 : i32
    %c0_56 = arith.constant 0 : index
    %c0_57 = arith.constant 0 : index
    %88 = vector.load %arg10[%c0_56, %c0_57] : memref<64x128xf32, #tpu.memory_space<vmem>>, vector<64x128xf32>
    %c0_58 = arith.constant 0 : index
    %c0_59 = arith.constant 0 : index
    %89 = vector.load %arg4[%c0_58, %c0_59] : memref<128x128xf32, #tpu.memory_space<vmem>>, vector<128x128xf32>
    %cst_60 = arith.constant dense<0.000000e+00> : vector<64x128xf32>
    %90 = tpu.matmul %88, %89, %cst_60 {dimension_numbers = #tpu.dot_dimension_numbers<[1], [0], [0], [1], [0, 0, 1, 1], [], []>} : vector<64x128xf32>, vector<128x128xf32>, vector<64x128xf32> -> vector<64x128xf32>
    %c0_61 = arith.constant 0 : index
    %c0_62 = arith.constant 0 : index
    %91 = vector.load %arg6[%c0_61, %c0_62] : memref<1x128xf32, #tpu.memory_space<vmem>>, vector<1x128xf32>
    %92 = vector.broadcast %91 : vector<1x128xf32> to vector<64x128xf32>
    %93 = arith.addf %90, %92 : vector<64x128xf32>
    %c0_63 = arith.constant 0 : index
    %c0_64 = arith.constant 0 : index
    %94 = vector.load %arg11[%c0_63, %c0_64] : memref<64x128xf32, #tpu.memory_space<vmem>>, vector<64x128xf32>
    tpu.vector_store %arg11[%c0_63, %c0_64], %93 {strides = array<i32>} : memref<64x128xf32, #tpu.memory_space<vmem>>, vector<64x128xf32>,
    %cst_65 = arith.constant 0.000000e+00 : f32
    %95 = vector.broadcast %cst_65 : f32 to vector<8x128xf32>
    %c0_i32_66 = arith.constant 0 : i32
    %c8_i32_67 = arith.constant 8 : i32
    %96 = arith.muli %c0_i32_66, %c8_i32_67 : i32
    %97 = tpu.assume_multiple %96, 8 : i32
    %98 = arith.index_cast %97 : i32 to index
    %c0_68 = arith.constant 0 : index
    %99 = vector.load %arg11[%98, %c0_68] : memref<64x128xf32, #tpu.memory_space<vmem>>, vector<8x128xf32>
    %c0_69 = arith.constant 0 : index
    %c0_70 = arith.constant 0 : index
    %100 = vector.load %arg5[%c0_69, %c0_70] : memref<128x128xf32, #tpu.memory_space<vmem>>, vector<128x128xf32>
    %cst_71 = arith.constant dense<0.000000e+00> : vector<8x128xf32>
    %101 = tpu.matmul %95, %100, %cst_71 {dimension_numbers = #tpu.dot_dimension_numbers<[1], [0], [0], [1], [0, 0, 1, 1], [], []>} : vector<8x128xf32>, vector<128x128xf32>, vector<8x128xf32> -> vector<8x128xf32>
    %102 = arith.addf %99, %101 : vector<8x128xf32>
    %103 = math.tanh %102 : vector<8x128xf32>
    %c1_i32_72 = arith.constant 1 : i32
    %c8_i32_73 = arith.constant 8 : i32
    %104 = arith.muli %c1_i32_72, %c8_i32_73 : i32
    %105 = tpu.assume_multiple %104, 8 : i32
    %106 = arith.index_cast %105 : i32 to index
    %c0_74 = arith.constant 0 : index
    %107 = vector.load %arg11[%106, %c0_74] : memref<64x128xf32, #tpu.memory_space<vmem>>, vector<8x128xf32>
    %c0_75 = arith.constant 0 : index
    %c0_76 = arith.constant 0 : index
    %108 = vector.load %arg5[%c0_75, %c0_76] : memref<128x128xf32, #tpu.memory_space<vmem>>, vector<128x128xf32>
    %cst_77 = arith.constant dense<0.000000e+00> : vector<8x128xf32>
    %109 = tpu.matmul %103, %108, %cst_77 {dimension_numbers = #tpu.dot_dimension_numbers<[1], [0], [0], [1], [0, 0, 1, 1], [], []>} : vector<8x128xf32>, vector<128x128xf32>, vector<8x128xf32> -> vector<8x128xf32>
    %110 = arith.addf %107, %109 : vector<8x128xf32>
    %111 = math.tanh %110 : vector<8x128xf32>
    %c2_i32_78 = arith.constant 2 : i32
    %c8_i32_79 = arith.constant 8 : i32
    %112 = arith.muli %c2_i32_78, %c8_i32_79 : i32
    %113 = tpu.assume_multiple %112, 8 : i32
    %114 = arith.index_cast %113 : i32 to index
    %c0_80 = arith.constant 0 : index
    %115 = vector.load %arg11[%114, %c0_80] : memref<64x128xf32, #tpu.memory_space<vmem>>, vector<8x128xf32>
    %c0_81 = arith.constant 0 : index
    %c0_82 = arith.constant 0 : index
    %116 = vector.load %arg5[%c0_81, %c0_82] : memref<128x128xf32, #tpu.memory_space<vmem>>, vector<128x128xf32>
    %cst_83 = arith.constant dense<0.000000e+00> : vector<8x128xf32>
    %117 = tpu.matmul %111, %116, %cst_83 {dimension_numbers = #tpu.dot_dimension_numbers<[1], [0], [0], [1], [0, 0, 1, 1], [], []>} : vector<8x128xf32>, vector<128x128xf32>, vector<8x128xf32> -> vector<8x128xf32>
    %118 = arith.addf %115, %117 : vector<8x128xf32>
    %119 = math.tanh %118 : vector<8x128xf32>
    %c3_i32_84 = arith.constant 3 : i32
    %c8_i32_85 = arith.constant 8 : i32
    %120 = arith.muli %c3_i32_84, %c8_i32_85 : i32
    %121 = tpu.assume_multiple %120, 8 : i32
    %122 = arith.index_cast %121 : i32 to index
    %c0_86 = arith.constant 0 : index
    %123 = vector.load %arg11[%122, %c0_86] : memref<64x128xf32, #tpu.memory_space<vmem>>, vector<8x128xf32>
    %c0_87 = arith.constant 0 : index
    %c0_88 = arith.constant 0 : index
    %124 = vector.load %arg5[%c0_87, %c0_88] : memref<128x128xf32, #tpu.memory_space<vmem>>, vector<128x128xf32>
    %cst_89 = arith.constant dense<0.000000e+00> : vector<8x128xf32>
    %125 = tpu.matmul %119, %124, %cst_89 {dimension_numbers = #tpu.dot_dimension_numbers<[1], [0], [0], [1], [0, 0, 1, 1], [], []>} : vector<8x128xf32>, vector<128x128xf32>, vector<8x128xf32> -> vector<8x128xf32>
    %126 = arith.addf %123, %125 : vector<8x128xf32>
    %127 = math.tanh %126 : vector<8x128xf32>
    %c4_i32_90 = arith.constant 4 : i32
    %c8_i32_91 = arith.constant 8 : i32
    %128 = arith.muli %c4_i32_90, %c8_i32_91 : i32
    %129 = tpu.assume_multiple %128, 8 : i32
    %130 = arith.index_cast %129 : i32 to index
    %c0_92 = arith.constant 0 : index
    %131 = vector.load %arg11[%130, %c0_92] : memref<64x128xf32, #tpu.memory_space<vmem>>, vector<8x128xf32>
    %c0_93 = arith.constant 0 : index
    %c0_94 = arith.constant 0 : index
    %132 = vector.load %arg5[%c0_93, %c0_94] : memref<128x128xf32, #tpu.memory_space<vmem>>, vector<128x128xf32>
    %cst_95 = arith.constant dense<0.000000e+00> : vector<8x128xf32>
    %133 = tpu.matmul %127, %132, %cst_95 {dimension_numbers = #tpu.dot_dimension_numbers<[1], [0], [0], [1], [0, 0, 1, 1], [], []>} : vector<8x128xf32>, vector<128x128xf32>, vector<8x128xf32> -> vector<8x128xf32>
    %134 = arith.addf %131, %133 : vector<8x128xf32>
    %135 = math.tanh %134 : vector<8x128xf32>
    %c5_i32_96 = arith.constant 5 : i32
    %c8_i32_97 = arith.constant 8 : i32
    %136 = arith.muli %c5_i32_96, %c8_i32_97 : i32
    %137 = tpu.assume_multiple %136, 8 : i32
    %138 = arith.index_cast %137 : i32 to index
    %c0_98 = arith.constant 0 : index
    %139 = vector.load %arg11[%138, %c0_98] : memref<64x128xf32, #tpu.memory_space<vmem>>, vector<8x128xf32>
    %c0_99 = arith.constant 0 : index
    %c0_100 = arith.constant 0 : index
    %140 = vector.load %arg5[%c0_99, %c0_100] : memref<128x128xf32, #tpu.memory_space<vmem>>, vector<128x128xf32>
    %cst_101 = arith.constant dense<0.000000e+00> : vector<8x128xf32>
    %141 = tpu.matmul %135, %140, %cst_101 {dimension_numbers = #tpu.dot_dimension_numbers<[1], [0], [0], [1], [0, 0, 1, 1], [], []>} : vector<8x128xf32>, vector<128x128xf32>, vector<8x128xf32> -> vector<8x128xf32>
    %142 = arith.addf %139, %141 : vector<8x128xf32>
    %143 = math.tanh %142 : vector<8x128xf32>
    %c6_i32_102 = arith.constant 6 : i32
    %c8_i32_103 = arith.constant 8 : i32
    %144 = arith.muli %c6_i32_102, %c8_i32_103 : i32
    %145 = tpu.assume_multiple %144, 8 : i32
    %146 = arith.index_cast %145 : i32 to index
    %c0_104 = arith.constant 0 : index
    %147 = vector.load %arg11[%146, %c0_104] : memref<64x128xf32, #tpu.memory_space<vmem>>, vector<8x128xf32>
    %c0_105 = arith.constant 0 : index
    %c0_106 = arith.constant 0 : index
    %148 = vector.load %arg5[%c0_105, %c0_106] : memref<128x128xf32, #tpu.memory_space<vmem>>, vector<128x128xf32>
    %cst_107 = arith.constant dense<0.000000e+00> : vector<8x128xf32>
    %149 = tpu.matmul %143, %148, %cst_107 {dimension_numbers = #tpu.dot_dimension_numbers<[1], [0], [0], [1], [0, 0, 1, 1], [], []>} : vector<8x128xf32>, vector<128x128xf32>, vector<8x128xf32> -> vector<8x128xf32>
    %150 = arith.addf %147, %149 : vector<8x128xf32>
    %151 = math.tanh %150 : vector<8x128xf32>
    %c7_i32_108 = arith.constant 7 : i32
    %c8_i32_109 = arith.constant 8 : i32
    %152 = arith.muli %c7_i32_108, %c8_i32_109 : i32
    %153 = tpu.assume_multiple %152, 8 : i32
    %154 = arith.index_cast %153 : i32 to index
    %c0_110 = arith.constant 0 : index
    %155 = vector.load %arg11[%154, %c0_110] : memref<64x128xf32, #tpu.memory_space<vmem>>, vector<8x128xf32>
    %c0_111 = arith.constant 0 : index
    %c0_112 = arith.constant 0 : index
    %156 = vector.load %arg5[%c0_111, %c0_112] : memref<128x128xf32, #tpu.memory_space<vmem>>, vector<128x128xf32>
    %cst_113 = arith.constant dense<0.000000e+00> : vector<8x128xf32>
    %157 = tpu.matmul %151, %156, %cst_113 {dimension_numbers = #tpu.dot_dimension_numbers<[1], [0], [0], [1], [0, 0, 1, 1], [], []>} : vector<8x128xf32>, vector<128x128xf32>, vector<8x128xf32> -> vector<8x128xf32>
    %158 = arith.addf %155, %157 : vector<8x128xf32>
    %159 = math.tanh %158 : vector<8x128xf32>
    %c8_i32_114 = arith.constant 8 : i32
    %c0_115 = arith.constant 0 : index
    %c0_116 = arith.constant 0 : index
    %160 = vector.load %arg7[%c0_115, %c0_116] : memref<128x128xf32, #tpu.memory_space<vmem>>, vector<128x128xf32>
    %cst_117 = arith.constant dense<0.000000e+00> : vector<8x128xf32>
    %161 = tpu.matmul %159, %160, %cst_117 {dimension_numbers = #tpu.dot_dimension_numbers<[1], [0], [0], [1], [0, 0, 1, 1], [], []>} : vector<8x128xf32>, vector<128x128xf32>, vector<8x128xf32> -> vector<8x128xf32>
    %c0_118 = arith.constant 0 : index
    %c0_119 = arith.constant 0 : index
    %162 = vector.load %arg8[%c0_118, %c0_119] : memref<1x128xf32, #tpu.memory_space<vmem>>, vector<1x128xf32>
    %163 = vector.broadcast %162 : vector<1x128xf32> to vector<8x128xf32>
    %164 = arith.addf %161, %163 : vector<8x128xf32>
    %c0_120 = arith.constant 0 : index
    %c0_121 = arith.constant 0 : index
    %165 = vector.load %arg9[%c0_120, %c0_121] : memref<8x128xf32, #tpu.memory_space<vmem>>, vector<8x128xf32>
    tpu.vector_store %arg9[%c0_120, %c0_121], %164 {strides = array<i32>} : memref<8x128xf32, #tpu.memory_space<vmem>>, vector<8x128xf32>,
    return
  }
}

</mosaic_0001>

<llo_original>
// kernel: tpu_custom_call.1
$region0: #{tpu_custom_call.1}
  #allocation0 [shape = 'u32[]', space=smem, size = 0x4, offset = 0x4, fixed_abs, tag = 'smem constant byte address 0x4 - core index']
  #allocation1 [shape = 'u32[144,128]{1,0:T(1,128)}', space=vmem, size = 0x12000, scoped, tag = 'internal scratch']
  #allocation2 [shape = 'f32[64,128]{1,0:T(8,128)}', space=vmem, size = 0x8000, scoped, tag = 'scratch operand']
  #allocation3 [shape = 'f32[64,128]{1,0:T(8,128)}', space=vmem, size = 0x8000, scoped, tag = 'scratch operand']
  %s0 = inlined_call_operand.hbm [shape: f32[64,128], index: 0, kind: input, shape index: {}]
  %s1 = inlined_call_operand.hbm [shape: f32[128,128], index: 1, kind: input, shape index: {}]
  %s2 = inlined_call_operand.hbm [shape: f32[128,128], index: 2, kind: input, shape index: {}]
  %s3 = inlined_call_operand.vmem [shape: f32[1,128], index: 3, kind: input, shape index: {}]
  %s4 = inlined_call_operand.hbm [shape: f32[128,128], index: 4, kind: input, shape index: {}]
  %s5 = inlined_call_operand.hbm [shape: f32[128,128], index: 5, kind: input, shape index: {}]
  %s6 = inlined_call_operand.vmem [shape: f32[1,128], index: 6, kind: input, shape index: {}]
  %s7 = inlined_call_operand.hbm [shape: f32[128,128], index: 7, kind: input, shape index: {}]
  %s8 = inlined_call_operand.vmem [shape: f32[1,128], index: 8, kind: input, shape index: {}]
  %s9 = inlined_call_operand.hbm [shape: f32[8,128], index: 9, kind: output, shape index: {}]
  %s10 = sld [smem:[#allocation0]]
  $region70: #{tpu_custom_call.1} parent=0
    _
  %s12 = ssub.s32 1, %s10
  %s13 = scalar_select 0, %s12, %s10
  $region1: #{tpu_custom_call.1} parent=0
    #allocation4 [shape = 'u8[32768]{0}', space=vmem, size = 0x8000, scoped, tag = 'input window, operand 0, single buffered']
    #allocation5 [shape = 's32[1]{0}', space=sflag, size = 0x4, scoped, tag = 'scoped memory for tpu_custom_call.1']
    #allocation6 [shape = 's32[1]{0}', space=sflag, size = 0x4, scoped, tag = 'scoped memory for tpu_custom_call.1']
    #allocation7 [shape = 'u8[65536]{0}', space=vmem, size = 0x10000, scoped, tag = 'input window, operand 1, single buffered']
    #allocation8 [shape = 's32[1]{0}', space=sflag, size = 0x4, scoped, tag = 'scoped memory for tpu_custom_call.1']
    #allocation9 [shape = 'u8[65536]{0}', space=vmem, size = 0x10000, scoped, tag = 'input window, operand 2, single buffered']
    #allocation10 [shape = 'u8[65536]{0}', space=vmem, size = 0x10000, scoped, tag = 'input window, operand 4, single buffered']
    #allocation11 [shape = 's32[1]{0}', space=sflag, size = 0x4, scoped, tag = 'scoped memory for tpu_custom_call.1']
    #allocation12 [shape = 'u8[65536]{0}', space=vmem, size = 0x10000, scoped, tag = 'input window, operand 5, single buffered']
    #allocation13 [shape = 'u8[65536]{0}', space=vmem, size = 0x10000, scoped, tag = 'input window, operand 7, single buffered']
    #allocation14 [shape = 's32[1]{0}', space=sflag, size = 0x4, scoped, tag = 'scoped memory for tpu_custom_call.1']
    #allocation15 [shape = 'u8[4096]{0}', space=vmem, size = 0x1000, scoped, tag = 'output window, operand 0, single buffered']
    %14 = vsyncpa [#allocation5], 0
    %15 = vsyncpa [#allocation8], 0
    %16 = vsyncpa [#allocation11], 0
    %17 = vsyncpa [#allocation14], 0
    %18 = vsyncpa [#allocation6], 0
    // Predicated region
    $region2: #{tpu_custom_call.1} parent=1 // pred_check
      _
    $region3: #{tpu_custom_call.1} parent=1 // pred_check_branch
      %20 = sbr.rel (0) target = $region5
    $region4: #{tpu_custom_call.1} parent=1 // pred_region
      %s22 = ssub.s32 1024, 1024
      %23 = vsyncadd [#allocation5], %s22
      %s24 = sshll.u32 [#allocation4], 4
      %s25 = int_to_ptr.vmem [resolvable:$true] %s24
      %30 = dma.hbm_to_vmem [thread:$0]  %s0, 1024, %s25, [#allocation5], 128, 128, 8
    $region5: #{tpu_custom_call.1} parent=1 // pred_fallthru
      _
    // Predicated region
    $region6: #{tpu_custom_call.1} parent=1 // pred_check
      _
    $region7: #{tpu_custom_call.1} parent=1 // pred_check_branch
      %32 = sbr.rel (0) target = $region9
    $region8: #{tpu_custom_call.1} parent=1 // pred_region
      %s34 = ssub.s32 2048, 2048
      %35 = vsyncadd [#allocation8], %s34
      %s36 = sshll.u32 [#allocation7], 4
      %s37 = int_to_ptr.vmem [resolvable:$true] %s36
      %42 = dma.hbm_to_vmem [thread:$0]  %s1, 2048, %s37, [#allocation8], 128, 128, 8
    $region9: #{tpu_custom_call.1} parent=1 // pred_fallthru
      _
    // Predicated region
    $region10: #{tpu_custom_call.1} parent=1 // pred_check
      _
    $region11: #{tpu_custom_call.1} parent=1 // pred_check_branch
      %44 = sbr.rel (0) target = $region13
    $region12: #{tpu_custom_call.1} parent=1 // pred_region
      %s46 = ssub.s32 2048, 2048
      %47 = vsyncadd [#allocation8], %s46
      %s48 = sshll.u32 [#allocation9], 4
      %s49 = int_to_ptr.vmem [resolvable:$true] %s48
      %54 = dma.hbm_to_vmem [thread:$0]  %s2, 2048, %s49, [#allocation8], 128, 128, 8
    $region13: #{tpu_custom_call.1} parent=1 // pred_fallthru
      _
    // Predicated region
    $region14: #{tpu_custom_call.1} parent=1 // pred_check
      _
    $region15: #{tpu_custom_call.1} parent=1 // pred_check_branch
      %56 = sbr.rel (0) target = $region17
    $region16: #{tpu_custom_call.1} parent=1 // pred_region
      _
    $region17: #{tpu_custom_call.1} parent=1 // pred_fallthru
      _
    // Predicated region
    $region18: #{tpu_custom_call.1} parent=1 // pred_check
      _
    $region19: #{tpu_custom_call.1} parent=1 // pred_check_branch
      %58 = sbr.rel (0) target = $region21
    $region20: #{tpu_custom_call.1} parent=1 // pred_region
      %s60 = ssub.s32 2048, 2048
      %61 = vsyncadd [#allocation11], %s60
      %s62 = sshll.u32 [#allocation10], 4
      %s63 = int_to_ptr.vmem [resolvable:$true] %s62
      %68 = dma.hbm_to_vmem [thread:$0]  %s4, 2048, %s63, [#allocation11], 128, 128, 8
    $region21: #{tpu_custom_call.1} parent=1 // pred_fallthru
      _
    // Predicated region
    $region22: #{tpu_custom_call.1} parent=1 // pred_check
      _
    $region23: #{tpu_custom_call.1} parent=1 // pred_check_branch
      %70 = sbr.rel (0) target = $region25
    $region24: #{tpu_custom_call.1} parent=1 // pred_region
      %s72 = ssub.s32 2048, 2048
      %73 = vsyncadd [#allocation11], %s72
      %s74 = sshll.u32 [#allocation12], 4
      %s75 = int_to_ptr.vmem [resolvable:$true] %s74
      %80 = dma.hbm_to_vmem [thread:$0]  %s5, 2048, %s75, [#allocation11], 128, 128, 8
    $region25: #{tpu_custom_call.1} parent=1 // pred_fallthru
      _
    // Predicated region
    $region26: #{tpu_custom_call.1} parent=1 // pred_check
      _
    $region27: #{tpu_custom_call.1} parent=1 // pred_check_branch
      %82 = sbr.rel (0) target = $region29
    $region28: #{tpu_custom_call.1} parent=1 // pred_region
      _
    $region29: #{tpu_custom_call.1} parent=1 // pred_fallthru
      _
    // Predicated region
    $region30: #{tpu_custom_call.1} parent=1 // pred_check
      _
    $region31: #{tpu_custom_call.1} parent=1 // pred_check_branch
      %84 = sbr.rel (0) target = $region33
    $region32: #{tpu_custom_call.1} parent=1 // pred_region
      %s86 = ssub.s32 2048, 2048
      %87 = vsyncadd [#allocation14], %s86
      %s88 = sshll.u32 [#allocation13], 4
      %s89 = int_to_ptr.vmem [resolvable:$true] %s88
      %94 = dma.hbm_to_vmem [thread:$0]  %s7, 2048, %s89, [#allocation14], 128, 128, 8
    $region33: #{tpu_custom_call.1} parent=1 // pred_fallthru
      _
    // Predicated region
    $region34: #{tpu_custom_call.1} parent=1 // pred_check
      _
    $region35: #{tpu_custom_call.1} parent=1 // pred_check_branch
      %96 = sbr.rel (0) target = $region37
    $region36: #{tpu_custom_call.1} parent=1 // pred_region
      _
    $region37: #{tpu_custom_call.1} parent=1 // pred_fallthru
      _
    // Predicated region
    $region38: #{tpu_custom_call.1} parent=1 // pred_check
      _
    $region39: #{tpu_custom_call.1} parent=1 // pred_check_branch
      %98 = sbr.rel (0) target = $region41
    $region40: #{tpu_custom_call.1} parent=1 // pred_region
      %99 = dma.done [#allocation5], 1024
    $region41: #{tpu_custom_call.1} parent=1 // pred_fallthru
      _
    // Predicated region
    $region42: #{tpu_custom_call.1} parent=1 // pred_check
      _
    $region43: #{tpu_custom_call.1} parent=1 // pred_check_branch
      %101 = sbr.rel (0) target = $region45
    $region44: #{tpu_custom_call.1} parent=1 // pred_region
      %102 = dma.done [#allocation8], 2048
    $region45: #{tpu_custom_call.1} parent=1 // pred_fallthru
      _
    // Predicated region
    $region46: #{tpu_custom_call.1} parent=1 // pred_check
      _
    $region47: #{tpu_custom_call.1} parent=1 // pred_check_branch
      %104 = sbr.rel (0) target = $region49
    $region48: #{tpu_custom_call.1} parent=1 // pred_region
      %105 = dma.done [#allocation8], 2048
    $region49: #{tpu_custom_call.1} parent=1 // pred_fallthru
      _
    // Predicated region
    $region50: #{tpu_custom_call.1} parent=1 // pred_check
      _
    $region51: #{tpu_custom_call.1} parent=1 // pred_check_branch
      %107 = sbr.rel (0) target = $region53
    $region52: #{tpu_custom_call.1} parent=1 // pred_region
      %108 = dma.done [#allocation11], 2048
    $region53: #{tpu_custom_call.1} parent=1 // pred_fallthru
      _
    // Predicated region
    $region54: #{tpu_custom_call.1} parent=1 // pred_check
      _
    $region55: #{tpu_custom_call.1} parent=1 // pred_check_branch
      %110 = sbr.rel (0) target = $region57
    $region56: #{tpu_custom_call.1} parent=1 // pred_region
      %111 = dma.done [#allocation11], 2048
    $region57: #{tpu_custom_call.1} parent=1 // pred_fallthru
      _
    // Predicated region
    $region58: #{tpu_custom_call.1} parent=1 // pred_check
      _
    $region59: #{tpu_custom_call.1} parent=1 // pred_check_branch
      %113 = sbr.rel (0) target = $region61
    $region60: #{tpu_custom_call.1} parent=1 // pred_region
      %114 = dma.done [#allocation14], 2048
    $region61: #{tpu_custom_call.1} parent=1 // pred_fallthru
      _
    %v115 = vld [vmem:[#allocation4] sm:$0xff]
    %v116 = vld [vmem:[#allocation4 + $0x8] sm:$0xff]
    %v117 = vld [vmem:[#allocation4 + $0x10] sm:$0xff]
    %v118 = vld [vmem:[#allocation4 + $0x18] sm:$0xff]
    %v119 = vld [vmem:[#allocation4 + $0x20] sm:$0xff]
    %v120 = vld [vmem:[#allocation4 + $0x28] sm:$0xff]
    %v121 = vld [vmem:[#allocation4 + $0x30] sm:$0xff]
    %v122 = vld [vmem:[#allocation4 + $0x38] sm:$0xff]
    %v123 = vld [vmem:[#allocation7] sm:$0xff]
    %v124 = vld [vmem:[#allocation7 + $0x8] sm:$0xff]
    %v125 = vld [vmem:[#allocation7 + $0x10] sm:$0xff]
    %v126 = vld [vmem:[#allocation7 + $0x18] sm:$0xff]
    %v127 = vld [vmem:[#allocation7 + $0x20] sm:$0xff]
    %v128 = vld [vmem:[#allocation7 + $0x28] sm:$0xff]
    %v129 = vld [vmem:[#allocation7 + $0x30] sm:$0xff]
    %v130 = vld [vmem:[#allocation7 + $0x38] sm:$0xff]
    %v131 = vld [vmem:[#allocation7 + $0x40] sm:$0xff]
    %v132 = vld [vmem:[#allocation7 + $0x48] sm:$0xff]
    %v133 = vld [vmem:[#allocation7 + $0x50] sm:$0xff]
    %v134 = vld [vmem:[#allocation7 + $0x58] sm:$0xff]
    %v135 = vld [vmem:[#allocation7 + $0x60] sm:$0xff]
    %v136 = vld [vmem:[#allocation7 + $0x68] sm:$0xff]
    %v137 = vld [vmem:[#allocation7 + $0x70] sm:$0xff]
    %v138 = vld [vmem:[#allocation7 + $0x78] sm:$0xff]
    %v139 = vld [vmem:[%s3] sm:$0x1]
    %v141 = vlaneseq
    %v142 = vshrl.u32 %v141, 7
    %v143 = vsub.s32 0, %v142
    %v144 = vrot.slane %v139, %v143
    %146 = vmatprep.subr.mxu0 0.0
    %147 = vmatpush1.msra.mxu0 %v123
    %148 = vmatprep.subr.mxu0 0.0
    %149 = vmatpush1.msra.mxu0 %v124
    %150 = vmatprep.subr.mxu0 0.0
    %151 = vmatpush1.msra.mxu0 %v125
    %152 = vmatprep.subr.mxu0 0.0
    %153 = vmatpush1.msra.mxu0 %v126
    %154 = vmatprep.subr.mxu0 0.0
    %155 = vmatpush1.msra.mxu0 %v127
    %156 = vmatprep.subr.mxu0 0.0
    %157 = vmatpush1.msra.mxu0 %v128
    %158 = vmatprep.subr.mxu0 0.0
    %159 = vmatpush1.msra.mxu0 %v129
    %160 = vmatprep.subr.mxu0 0.0
    %161 = vmatpush1.msra.mxu0 %v130
    %162 = vmatprep.subr.mxu0 0.0
    %163 = vmatpush1.msra.mxu0 %v131
    %164 = vmatprep.subr.mxu0 0.0
    %165 = vmatpush1.msra.mxu0 %v132
    %166 = vmatprep.subr.mxu0 0.0
    %167 = vmatpush1.msra.mxu0 %v133
    %168 = vmatprep.subr.mxu0 0.0
    %169 = vmatpush1.msra.mxu0 %v134
    %170 = vmatprep.subr.mxu0 0.0
    %171 = vmatpush1.msra.mxu0 %v135
    %172 = vmatprep.subr.mxu0 0.0
    %173 = vmatpush1.msra.mxu0 %v136
    %174 = vmatprep.subr.mxu0 0.0
    %175 = vmatpush1.msra.mxu0 %v137
    %176 = vmatprep.subr.mxu0 0.0
    %177 = vmatpush1.msra.mxu0 %v138
    %178 = vmatprep.subr.mxu0 0.0
    %179 = vmatpush1.msra.mxu0 0.0
    %180 = vmatprep.subr.mxu0 0.0
    %181 = vmatpush1.msra.mxu0 0.0
    %182 = vmatprep.subr.mxu0 0.0
    %183 = vmatpush1.msra.mxu0 0.0
    %184 = vmatprep.subr.mxu0 0.0
    %185 = vmatpush1.msra.mxu0 0.0
    %186 = vmatprep.subr.mxu0 0.0
    %187 = vmatpush1.msra.mxu0 0.0
    %188 = vmatprep.subr.mxu0 0.0
    %189 = vmatpush1.msra.mxu0 0.0
    %190 = vmatprep.subr.mxu0 0.0
    %191 = vmatpush1.msra.mxu0 0.0
    %192 = vmatprep.subr.mxu0 0.0
    %193 = vmatpush1.msra.mxu0 0.0
    %194 = vmatprep.subr.mxu0 0.0
    %195 = vmatpush1.msra.mxu0 0.0
    %196 = vmatprep.subr.mxu0 0.0
    %197 = vmatpush1.msra.mxu0 0.0
    %198 = vmatprep.subr.mxu0 0.0
    %199 = vmatpush1.msra.mxu0 0.0
    %200 = vmatprep.subr.mxu0 0.0
    %201 = vmatpush1.msra.mxu0 0.0
    %202 = vmatprep.subr.mxu0 0.0
    %203 = vmatpush1.msra.mxu0 0.0
    %204 = vmatprep.subr.mxu0 0.0
    %205 = vmatpush1.msra.mxu0 0.0
    %206 = vmatprep.subr.mxu0 0.0
    %207 = vmatpush1.msra.mxu0 0.0
    %208 = vmatprep.subr.mxu0 0.0
    %209 = vmatpush1.msra.mxu0 0.0
    %210 = vmatprep.mubr.f32.mxu0 0.0
    %211 = vmatmul.mubr.f32.gmra.mrb[0].mxu0 %v115
    %v212 = vpop.f32.mrb[0].mxu0
    %v213 = vadd.f32 %v144, %v212
    %v214 = vpop.f32.mrb[0].mxu0
    %215 = vmatprep.mubr.f32.mxu0 0.0
    %216 = vmatmul.mubr.f32.gmra.mrb[0].mxu0 %v116
    %v217 = vpop.f32.mrb[0].mxu0
    %v218 = vadd.f32 %v144, %v217
    %v219 = vpop.f32.mrb[0].mxu0
    %220 = vmatprep.mubr.f32.mxu0 0.0
    %221 = vmatmul.mubr.f32.gmra.mrb[0].mxu0 %v117
    %v222 = vpop.f32.mrb[0].mxu0
    %v223 = vadd.f32 %v144, %v222
    %v224 = vpop.f32.mrb[0].mxu0
    %225 = vmatprep.mubr.f32.mxu0 0.0
    %226 = vmatmul.mubr.f32.gmra.mrb[0].mxu0 %v118
    %v227 = vpop.f32.mrb[0].mxu0
    %v228 = vadd.f32 %v144, %v227
    %v229 = vpop.f32.mrb[0].mxu0
    %230 = vmatprep.mubr.f32.mxu0 0.0
    %231 = vmatmul.mubr.f32.gmra.mrb[0].mxu0 %v119
    %v232 = vpop.f32.mrb[0].mxu0
    %v233 = vadd.f32 %v144, %v232
    %v234 = vpop.f32.mrb[0].mxu0
    %235 = vmatprep.mubr.f32.mxu0 0.0
    %236 = vmatmul.mubr.f32.gmra.mrb[0].mxu0 %v120
    %v237 = vpop.f32.mrb[0].mxu0
    %v238 = vadd.f32 %v144, %v237
    %v239 = vpop.f32.mrb[0].mxu0
    %240 = vmatprep.mubr.f32.mxu0 0.0
    %241 = vmatmul.mubr.f32.gmra.mrb[0].mxu0 %v121
    %v242 = vpop.f32.mrb[0].mxu0
    %v243 = vadd.f32 %v144, %v242
    %v244 = vpop.f32.mrb[0].mxu0
    %245 = vmatprep.mubr.f32.mxu0 0.0
    %246 = vmatmul.mubr.f32.gmra.mrb[0].mxu0 %v122
    %v247 = vpop.f32.mrb[0].mxu0
    %v248 = vadd.f32 %v144, %v247
    %v249 = vpop.f32.mrb[0].mxu0
    %250 = vdwg.mxu0
    %251 = vst [vmem:[#allocation2] sm:$0xff] %v213
    %252 = vst [vmem:[#allocation2 + $0x8] sm:$0xff] %v218
    %253 = vst [vmem:[#allocation2 + $0x10] sm:$0xff] %v223
    %254 = vst [vmem:[#allocation2 + $0x18] sm:$0xff] %v228
    %255 = vst [vmem:[#allocation2 + $0x20] sm:$0xff] %v233
    %256 = vst [vmem:[#allocation2 + $0x28] sm:$0xff] %v238
    %257 = vst [vmem:[#allocation2 + $0x30] sm:$0xff] %v243
    %258 = vst [vmem:[#allocation2 + $0x38] sm:$0xff] %v248
    %v259 = vld [vmem:[#allocation2] sm:$0xff]
    %v260 = vld [vmem:[#allocation9] sm:$0xff]
    %v261 = vld [vmem:[#allocation9 + $0x8] sm:$0xff]
    %v262 = vld [vmem:[#allocation9 + $0x10] sm:$0xff]
    %v263 = vld [vmem:[#allocation9 + $0x18] sm:$0xff]
    %v264 = vld [vmem:[#allocation9 + $0x20] sm:$0xff]
    %v265 = vld [vmem:[#allocation9 + $0x28] sm:$0xff]
    %v266 = vld [vmem:[#allocation9 + $0x30] sm:$0xff]
    %v267 = vld [vmem:[#allocation9 + $0x38] sm:$0xff]
    %v268 = vld [vmem:[#allocation9 + $0x40] sm:$0xff]
    %v269 = vld [vmem:[#allocation9 + $0x48] sm:$0xff]
    %v270 = vld [vmem:[#allocation9 + $0x50] sm:$0xff]
    %v271 = vld [vmem:[#allocation9 + $0x58] sm:$0xff]
    %v272 = vld [vmem:[#allocation9 + $0x60] sm:$0xff]
    %v273 = vld [vmem:[#allocation9 + $0x68] sm:$0xff]
    %v274 = vld [vmem:[#allocation9 + $0x70] sm:$0xff]
    %v275 = vld [vmem:[#allocation9 + $0x78] sm:$0xff]
    %276 = vmatprep.subr.mxu0 0.0
    %277 = vmatpush1.msra.mxu0 %v260
    %278 = vmatprep.subr.mxu0 0.0
    %279 = vmatpush1.msra.mxu0 %v261
    %280 = vmatprep.subr.mxu0 0.0
    %281 = vmatpush1.msra.mxu0 %v262
    %282 = vmatprep.subr.mxu0 0.0
    %283 = vmatpush1.msra.mxu0 %v263
    %284 = vmatprep.subr.mxu0 0.0
    %285 = vmatpush1.msra.mxu0 %v264
    %286 = vmatprep.subr.mxu0 0.0
    %287 = vmatpush1.msra.mxu0 %v265
    %288 = vmatprep.subr.mxu0 0.0
    %289 = vmatpush1.msra.mxu0 %v266
    %290 = vmatprep.subr.mxu0 0.0
    %291 = vmatpush1.msra.mxu0 %v267
    %292 = vmatprep.subr.mxu0 0.0
    %293 = vmatpush1.msra.mxu0 %v268
    %294 = vmatprep.subr.mxu0 0.0
    %295 = vmatpush1.msra.mxu0 %v269
    %296 = vmatprep.subr.mxu0 0.0
    %297 = vmatpush1.msra.mxu0 %v270
    %298 = vmatprep.subr.mxu0 0.0
    %299 = vmatpush1.msra.mxu0 %v271
    %300 = vmatprep.subr.mxu0 0.0
    %301 = vmatpush1.msra.mxu0 %v272
    %302 = vmatprep.subr.mxu0 0.0
    %303 = vmatpush1.msra.mxu0 %v273
    %304 = vmatprep.subr.mxu0 0.0
    %305 = vmatpush1.msra.mxu0 %v274
    %306 = vmatprep.subr.mxu0 0.0
    %307 = vmatpush1.msra.mxu0 %v275
    %308 = vmatprep.subr.mxu0 0.0
    %309 = vmatpush1.msra.mxu0 0.0
    %310 = vmatprep.subr.mxu0 0.0
    %311 = vmatpush1.msra.mxu0 0.0
    %312 = vmatprep.subr.mxu0 0.0
    %313 = vmatpush1.msra.mxu0 0.0
    %314 = vmatprep.subr.mxu0 0.0
    %315 = vmatpush1.msra.mxu0 0.0
    %316 = vmatprep.subr.mxu0 0.0
    %317 = vmatpush1.msra.mxu0 0.0
    %318 = vmatprep.subr.mxu0 0.0
    %319 = vmatpush1.msra.mxu0 0.0
    %320 = vmatprep.subr.mxu0 0.0
    %321 = vmatpush1.msra.mxu0 0.0
    %322 = vmatprep.subr.mxu0 0.0
    %323 = vmatpush1.msra.mxu0 0.0
    %324 = vmatprep.subr.mxu0 0.0
    %325 = vmatpush1.msra.mxu0 0.0
    %326 = vmatprep.subr.mxu0 0.0
    %327 = vmatpush1.msra.mxu0 0.0
    %328 = vmatprep.subr.mxu0 0.0
    %329 = vmatpush1.msra.mxu0 0.0
    %330 = vmatprep.subr.mxu0 0.0
    %331 = vmatpush1.msra.mxu0 0.0
    %332 = vmatprep.subr.mxu0 0.0
    %333 = vmatpush1.msra.mxu0 0.0
    %334 = vmatprep.subr.mxu0 0.0
    %335 = vmatpush1.msra.mxu0 0.0
    %336 = vmatprep.subr.mxu0 0.0
    %337 = vmatpush1.msra.mxu0 0.0
    %338 = vmatprep.subr.mxu0 0.0
    %339 = vmatpush1.msra.mxu0 0.0
    %340 = vmatprep.mubr.f32.mxu0 0.0
    %341 = vmatmul.mubr.f32.gmra.mrb[0].mxu0 0.0
    %v342 = vpop.f32.mrb[0].mxu0
    %v343 = vadd.f32 0.0, %v342
    %v344 = vpop.f32.mrb[0].mxu0
    %345 = vdwg.mxu0
    %v346 = vadd.f32 %v259, %v343
    %v347 = vtanh.pop %v346
    %348 = vst [vmem:[#allocation2] sm:$0xff] %v347
    %s349 = scalar_lea.vmem [#allocation2], 8
    %v350 = vld [vmem:[%s349] sm:$0xff]
    %v351 = vld [vmem:[#allocation9] sm:$0xff]
    %v352 = vld [vmem:[#allocation9 + $0x8] sm:$0xff]
    %v353 = vld [vmem:[#allocation9 + $0x10] sm:$0xff]
    %v354 = vld [vmem:[#allocation9 + $0x18] sm:$0xff]
    %v355 = vld [vmem:[#allocation9 + $0x20] sm:$0xff]
    %v356 = vld [vmem:[#allocation9 + $0x28] sm:$0xff]
    %v357 = vld [vmem:[#allocation9 + $0x30] sm:$0xff]
    %v358 = vld [vmem:[#allocation9 + $0x38] sm:$0xff]
    %v359 = vld [vmem:[#allocation9 + $0x40] sm:$0xff]
    %v360 = vld [vmem:[#allocation9 + $0x48] sm:$0xff]
    %v361 = vld [vmem:[#allocation9 + $0x50] sm:$0xff]
    %v362 = vld [vmem:[#allocation9 + $0x58] sm:$0xff]
    %v363 = vld [vmem:[#allocation9 + $0x60] sm:$0xff]
    %v364 = vld [vmem:[#allocation9 + $0x68] sm:$0xff]
    %v365 = vld [vmem:[#allocation9 + $0x70] sm:$0xff]
    %v366 = vld [vmem:[#allocation9 + $0x78] sm:$0xff]
    %367 = vmatprep.subr.mxu0 0.0
    %368 = vmatpush1.msra.mxu0 %v351
    %369 = vmatprep.subr.mxu0 0.0
    %370 = vmatpush1.msra.mxu0 %v352
    %371 = vmatprep.subr.mxu0 0.0
    %372 = vmatpush1.msra.mxu0 %v353
    %373 = vmatprep.subr.mxu0 0.0
    %374 = vmatpush1.msra.mxu0 %v354
    %375 = vmatprep.subr.mxu0 0.0
    %376 = vmatpush1.msra.mxu0 %v355
    %377 = vmatprep.subr.mxu0 0.0
    %378 = vmatpush1.msra.mxu0 %v356
    %379 = vmatprep.subr.mxu0 0.0
    %380 = vmatpush1.msra.mxu0 %v357
    %381 = vmatprep.subr.mxu0 0.0
    %382 = vmatpush1.msra.mxu0 %v358
    %383 = vmatprep.subr.mxu0 0.0
    %384 = vmatpush1.msra.mxu0 %v359
    %385 = vmatprep.subr.mxu0 0.0
    %386 = vmatpush1.msra.mxu0 %v360
    %387 = vmatprep.subr.mxu0 0.0
    %388 = vmatpush1.msra.mxu0 %v361
    %389 = vmatprep.subr.mxu0 0.0
    %390 = vmatpush1.msra.mxu0 %v362
    %391 = vmatprep.subr.mxu0 0.0
    %392 = vmatpush1.msra.mxu0 %v363
    %393 = vmatprep.subr.mxu0 0.0
    %394 = vmatpush1.msra.mxu0 %v364
    %395 = vmatprep.subr.mxu0 0.0
    %396 = vmatpush1.msra.mxu0 %v365
    %397 = vmatprep.subr.mxu0 0.0
    %398 = vmatpush1.msra.mxu0 %v366
    %399 = vmatprep.subr.mxu0 0.0
    %400 = vmatpush1.msra.mxu0 0.0
    %401 = vmatprep.subr.mxu0 0.0
    %402 = vmatpush1.msra.mxu0 0.0
    %403 = vmatprep.subr.mxu0 0.0
    %404 = vmatpush1.msra.mxu0 0.0
    %405 = vmatprep.subr.mxu0 0.0
    %406 = vmatpush1.msra.mxu0 0.0
    %407 = vmatprep.subr.mxu0 0.0
    %408 = vmatpush1.msra.mxu0 0.0
    %409 = vmatprep.subr.mxu0 0.0
    %410 = vmatpush1.msra.mxu0 0.0
    %411 = vmatprep.subr.mxu0 0.0
    %412 = vmatpush1.msra.mxu0 0.0
    %413 = vmatprep.subr.mxu0 0.0
    %414 = vmatpush1.msra.mxu0 0.0
    %415 = vmatprep.subr.mxu0 0.0
    %416 = vmatpush1.msra.mxu0 0.0
    %417 = vmatprep.subr.mxu0 0.0
    %418 = vmatpush1.msra.mxu0 0.0
    %419 = vmatprep.subr.mxu0 0.0
    %420 = vmatpush1.msra.mxu0 0.0
    %421 = vmatprep.subr.mxu0 0.0
    %422 = vmatpush1.msra.mxu0 0.0
    %423 = vmatprep.subr.mxu0 0.0
    %424 = vmatpush1.msra.mxu0 0.0
    %425 = vmatprep.subr.mxu0 0.0
    %426 = vmatpush1.msra.mxu0 0.0
    %427 = vmatprep.subr.mxu0 0.0
    %428 = vmatpush1.msra.mxu0 0.0
    %429 = vmatprep.subr.mxu0 0.0
    %430 = vmatpush1.msra.mxu0 0.0
    %431 = vmatprep.mubr.f32.mxu0 0.0
    %432 = vmatmul.mubr.f32.gmra.mrb[0].mxu0 %v347
    %v433 = vpop.f32.mrb[0].mxu0
    %v434 = vadd.f32 0.0, %v433
    %v435 = vpop.f32.mrb[0].mxu0
    %436 = vdwg.mxu0
    %v437 = vadd.f32 %v350, %v434
    %v438 = vtanh.pop %v437
    %439 = vst [vmem:[%s349] sm:$0xff] %v438
    %s440 = scalar_lea.vmem [#allocation2], 16
    %v441 = vld [vmem:[%s440] sm:$0xff]
    %v442 = vld [vmem:[#allocation9] sm:$0xff]
    %v443 = vld [vmem:[#allocation9 + $0x8] sm:$0xff]
    %v444 = vld [vmem:[#allocation9 + $0x10] sm:$0xff]
    %v445 = vld [vmem:[#allocation9 + $0x18] sm:$0xff]
    %v446 = vld [vmem:[#allocation9 + $0x20] sm:$0xff]
    %v447 = vld [vmem:[#allocation9 + $0x28] sm:$0xff]
    %v448 = vld [vmem:[#allocation9 + $0x30] sm:$0xff]
    %v449 = vld [vmem:[#allocation9 + $0x38] sm:$0xff]
    %v450 = vld [vmem:[#allocation9 + $0x40] sm:$0xff]
    %v451 = vld [vmem:[#allocation9 + $0x48] sm:$0xff]
    %v452 = vld [vmem:[#allocation9 + $0x50] sm:$0xff]
    %v453 = vld [vmem:[#allocation9 + $0x58] sm:$0xff]
    %v454 = vld [vmem:[#allocation9 + $0x60] sm:$0xff]
    %v455 = vld [vmem:[#allocation9 + $0x68] sm:$0xff]
    %v456 = vld [vmem:[#allocation9 + $0x70] sm:$0xff]
    %v457 = vld [vmem:[#allocation9 + $0x78] sm:$0xff]
    %458 = vmatprep.subr.mxu0 0.0
    %459 = vmatpush1.msra.mxu0 %v442
    %460 = vmatprep.subr.mxu0 0.0
    %461 = vmatpush1.msra.mxu0 %v443
    %462 = vmatprep.subr.mxu0 0.0
    %463 = vmatpush1.msra.mxu0 %v444
    %464 = vmatprep.subr.mxu0 0.0
    %465 = vmatpush1.msra.mxu0 %v445
    %466 = vmatprep.subr.mxu0 0.0
    %467 = vmatpush1.msra.mxu0 %v446
    %468 = vmatprep.subr.mxu0 0.0
    %469 = vmatpush1.msra.mxu0 %v447
    %470 = vmatprep.subr.mxu0 0.0
    %471 = vmatpush1.msra.mxu0 %v448
    %472 = vmatprep.subr.mxu0 0.0
    %473 = vmatpush1.msra.mxu0 %v449
    %474 = vmatprep.subr.mxu0 0.0
    %475 = vmatpush1.msra.mxu0 %v450
    %476 = vmatprep.subr.mxu0 0.0
    %477 = vmatpush1.msra.mxu0 %v451
    %478 = vmatprep.subr.mxu0 0.0
    %479 = vmatpush1.msra.mxu0 %v452
    %480 = vmatprep.subr.mxu0 0.0
    %481 = vmatpush1.msra.mxu0 %v453
    %482 = vmatprep.subr.mxu0 0.0
    %483 = vmatpush1.msra.mxu0 %v454
    %484 = vmatprep.subr.mxu0 0.0
    %485 = vmatpush1.msra.mxu0 %v455
    %486 = vmatprep.subr.mxu0 0.0
    %487 = vmatpush1.msra.mxu0 %v456
    %488 = vmatprep.subr.mxu0 0.0
    %489 = vmatpush1.msra.mxu0 %v457
    %490 = vmatprep.subr.mxu0 0.0
    %491 = vmatpush1.msra.mxu0 0.0
    %492 = vmatprep.subr.mxu0 0.0
    %493 = vmatpush1.msra.mxu0 0.0
    %494 = vmatprep.subr.mxu0 0.0
    %495 = vmatpush1.msra.mxu0 0.0
    %496 = vmatprep.subr.mxu0 0.0
    %497 = vmatpush1.msra.mxu0 0.0
    %498 = vmatprep.subr.mxu0 0.0
    %499 = vmatpush1.msra.mxu0 0.0
    %500 = vmatprep.subr.mxu0 0.0
    %501 = vmatpush1.msra.mxu0 0.0
    %502 = vmatprep.subr.mxu0 0.0
    %503 = vmatpush1.msra.mxu0 0.0
    %504 = vmatprep.subr.mxu0 0.0
    %505 = vmatpush1.msra.mxu0 0.0
    %506 = vmatprep.subr.mxu0 0.0
    %507 = vmatpush1.msra.mxu0 0.0
    %508 = vmatprep.subr.mxu0 0.0
    %509 = vmatpush1.msra.mxu0 0.0
    %510 = vmatprep.subr.mxu0 0.0
    %511 = vmatpush1.msra.mxu0 0.0
    %512 = vmatprep.subr.mxu0 0.0
    %513 = vmatpush1.msra.mxu0 0.0
    %514 = vmatprep.subr.mxu0 0.0
    %515 = vmatpush1.msra.mxu0 0.0
    %516 = vmatprep.subr.mxu0 0.0
    %517 = vmatpush1.msra.mxu0 0.0
    %518 = vmatprep.subr.mxu0 0.0
    %519 = vmatpush1.msra.mxu0 0.0
    %520 = vmatprep.subr.mxu0 0.0
    %521 = vmatpush1.msra.mxu0 0.0
    %522 = vmatprep.mubr.f32.mxu0 0.0
    %523 = vmatmul.mubr.f32.gmra.mrb[0].mxu0 %v438
    %v524 = vpop.f32.mrb[0].mxu0
    %v525 = vadd.f32 0.0, %v524
    %v526 = vpop.f32.mrb[0].mxu0
    %527 = vdwg.mxu0
    %v528 = vadd.f32 %v441, %v525
    %v529 = vtanh.pop %v528
    %530 = vst [vmem:[%s440] sm:$0xff] %v529
    %s531 = scalar_lea.vmem [#allocation2], 24
    %v532 = vld [vmem:[%s531] sm:$0xff]
    %v533 = vld [vmem:[#allocation9] sm:$0xff]
    %v534 = vld [vmem:[#allocation9 + $0x8] sm:$0xff]
    %v535 = vld [vmem:[#allocation9 + $0x10] sm:$0xff]
    %v536 = vld [vmem:[#allocation9 + $0x18] sm:$0xff]
    %v537 = vld [vmem:[#allocation9 + $0x20] sm:$0xff]
    %v538 = vld [vmem:[#allocation9 + $0x28] sm:$0xff]
    %v539 = vld [vmem:[#allocation9 + $0x30] sm:$0xff]
    %v540 = vld [vmem:[#allocation9 + $0x38] sm:$0xff]
    %v541 = vld [vmem:[#allocation9 + $0x40] sm:$0xff]
    %v542 = vld [vmem:[#allocation9 + $0x48] sm:$0xff]
    %v543 = vld [vmem:[#allocation9 + $0x50] sm:$0xff]
    %v544 = vld [vmem:[#allocation9 + $0x58] sm:$0xff]
    %v545 = vld [vmem:[#allocation9 + $0x60] sm:$0xff]
    %v546 = vld [vmem:[#allocation9 + $0x68] sm:$0xff]
    %v547 = vld [vmem:[#allocation9 + $0x70] sm:$0xff]
    %v548 = vld [vmem:[#allocation9 + $0x78] sm:$0xff]
    %549 = vmatprep.subr.mxu0 0.0
    %550 = vmatpush1.msra.mxu0 %v533
    %551 = vmatprep.subr.mxu0 0.0
    %552 = vmatpush1.msra.mxu0 %v534
    %553 = vmatprep.subr.mxu0 0.0
    %554 = vmatpush1.msra.mxu0 %v535
    %555 = vmatprep.subr.mxu0 0.0
    %556 = vmatpush1.msra.mxu0 %v536
    %557 = vmatprep.subr.mxu0 0.0
    %558 = vmatpush1.msra.mxu0 %v537
    %559 = vmatprep.subr.mxu0 0.0
    %560 = vmatpush1.msra.mxu0 %v538
    %561 = vmatprep.subr.mxu0 0.0
    %562 = vmatpush1.msra.mxu0 %v539
    %563 = vmatprep.subr.mxu0 0.0
    %564 = vmatpush1.msra.mxu0 %v540
    %565 = vmatprep.subr.mxu0 0.0
    %566 = vmatpush1.msra.mxu0 %v541
    %567 = vmatprep.subr.mxu0 0.0
    %568 = vmatpush1.msra.mxu0 %v542
    %569 = vmatprep.subr.mxu0 0.0
    %570 = vmatpush1.msra.mxu0 %v543
    %571 = vmatprep.subr.mxu0 0.0
    %572 = vmatpush1.msra.mxu0 %v544
    %573 = vmatprep.subr.mxu0 0.0
    %574 = vmatpush1.msra.mxu0 %v545
    %575 = vmatprep.subr.mxu0 0.0
    %576 = vmatpush1.msra.mxu0 %v546
    %577 = vmatprep.subr.mxu0 0.0
    %578 = vmatpush1.msra.mxu0 %v547
    %579 = vmatprep.subr.mxu0 0.0
    %580 = vmatpush1.msra.mxu0 %v548
    %581 = vmatprep.subr.mxu0 0.0
    %582 = vmatpush1.msra.mxu0 0.0
    %583 = vmatprep.subr.mxu0 0.0
    %584 = vmatpush1.msra.mxu0 0.0
    %585 = vmatprep.subr.mxu0 0.0
    %586 = vmatpush1.msra.mxu0 0.0
    %587 = vmatprep.subr.mxu0 0.0
    %588 = vmatpush1.msra.mxu0 0.0
    %589 = vmatprep.subr.mxu0 0.0
    %590 = vmatpush1.msra.mxu0 0.0
    %591 = vmatprep.subr.mxu0 0.0
    %592 = vmatpush1.msra.mxu0 0.0
    %593 = vmatprep.subr.mxu0 0.0
    %594 = vmatpush1.msra.mxu0 0.0
    %595 = vmatprep.subr.mxu0 0.0
    %596 = vmatpush1.msra.mxu0 0.0
    %597 = vmatprep.subr.mxu0 0.0
    %598 = vmatpush1.msra.mxu0 0.0
    %599 = vmatprep.subr.mxu0 0.0
    %600 = vmatpush1.msra.mxu0 0.0
    %601 = vmatprep.subr.mxu0 0.0
    %602 = vmatpush1.msra.mxu0 0.0
    %603 = vmatprep.subr.mxu0 0.0
    %604 = vmatpush1.msra.mxu0 0.0
    %605 = vmatprep.subr.mxu0 0.0
    %606 = vmatpush1.msra.mxu0 0.0
    %607 = vmatprep.subr.mxu0 0.0
    %608 = vmatpush1.msra.mxu0 0.0
    %609 = vmatprep.subr.mxu0 0.0
    %610 = vmatpush1.msra.mxu0 0.0
    %611 = vmatprep.subr.mxu0 0.0
    %612 = vmatpush1.msra.mxu0 0.0
    %613 = vmatprep.mubr.f32.mxu0 0.0
    %614 = vmatmul.mubr.f32.gmra.mrb[0].mxu0 %v529
    %v615 = vpop.f32.mrb[0].mxu0
    %v616 = vadd.f32 0.0, %v615
    %v617 = vpop.f32.mrb[0].mxu0
    %618 = vdwg.mxu0
    %v619 = vadd.f32 %v532, %v616
    %v620 = vtanh.pop %v619
    %621 = vst [vmem:[%s531] sm:$0xff] %v620
    %s622 = scalar_lea.vmem [#allocation2], 32
    %v623 = vld [vmem:[%s622] sm:$0xff]
    %v624 = vld [vmem:[#allocation9] sm:$0xff]
    %v625 = vld [vmem:[#allocation9 + $0x8] sm:$0xff]
    %v626 = vld [vmem:[#allocation9 + $0x10] sm:$0xff]
    %v627 = vld [vmem:[#allocation9 + $0x18] sm:$0xff]
    %v628 = vld [vmem:[#allocation9 + $0x20] sm:$0xff]
    %v629 = vld [vmem:[#allocation9 + $0x28] sm:$0xff]
    %v630 = vld [vmem:[#allocation9 + $0x30] sm:$0xff]
    %v631 = vld [vmem:[#allocation9 + $0x38] sm:$0xff]
    %v632 = vld [vmem:[#allocation9 + $0x40] sm:$0xff]
    %v633 = vld [vmem:[#allocation9 + $0x48] sm:$0xff]
    %v634 = vld [vmem:[#allocation9 + $0x50] sm:$0xff]
    %v635 = vld [vmem:[#allocation9 + $0x58] sm:$0xff]
    %v636 = vld [vmem:[#allocation9 + $0x60] sm:$0xff]
    %v637 = vld [vmem:[#allocation9 + $0x68] sm:$0xff]
    %v638 = vld [vmem:[#allocation9 + $0x70] sm:$0xff]
    %v639 = vld [vmem:[#allocation9 + $0x78] sm:$0xff]
    %640 = vmatprep.subr.mxu0 0.0
    %641 = vmatpush1.msra.mxu0 %v624
    %642 = vmatprep.subr.mxu0 0.0
    %643 = vmatpush1.msra.mxu0 %v625
    %644 = vmatprep.subr.mxu0 0.0
    %645 = vmatpush1.msra.mxu0 %v626
    %646 = vmatprep.subr.mxu0 0.0
    %647 = vmatpush1.msra.mxu0 %v627
    %648 = vmatprep.subr.mxu0 0.0
    %649 = vmatpush1.msra.mxu0 %v628
    %650 = vmatprep.subr.mxu0 0.0
    %651 = vmatpush1.msra.mxu0 %v629
    %652 = vmatprep.subr.mxu0 0.0
    %653 = vmatpush1.msra.mxu0 %v630
    %654 = vmatprep.subr.mxu0 0.0
    %655 = vmatpush1.msra.mxu0 %v631
    %656 = vmatprep.subr.mxu0 0.0
    %657 = vmatpush1.msra.mxu0 %v632
    %658 = vmatprep.subr.mxu0 0.0
    %659 = vmatpush1.msra.mxu0 %v633
    %660 = vmatprep.subr.mxu0 0.0
    %661 = vmatpush1.msra.mxu0 %v634
    %662 = vmatprep.subr.mxu0 0.0
    %663 = vmatpush1.msra.mxu0 %v635
    %664 = vmatprep.subr.mxu0 0.0
    %665 = vmatpush1.msra.mxu0 %v636
    %666 = vmatprep.subr.mxu0 0.0
    %667 = vmatpush1.msra.mxu0 %v637
    %668 = vmatprep.subr.mxu0 0.0
    %669 = vmatpush1.msra.mxu0 %v638
    %670 = vmatprep.subr.mxu0 0.0
    %671 = vmatpush1.msra.mxu0 %v639
    %672 = vmatprep.subr.mxu0 0.0
    %673 = vmatpush1.msra.mxu0 0.0
    %674 = vmatprep.subr.mxu0 0.0
    %675 = vmatpush1.msra.mxu0 0.0
    %676 = vmatprep.subr.mxu0 0.0
    %677 = vmatpush1.msra.mxu0 0.0
    %678 = vmatprep.subr.mxu0 0.0
    %679 = vmatpush1.msra.mxu0 0.0
    %680 = vmatprep.subr.mxu0 0.0
    %681 = vmatpush1.msra.mxu0 0.0
    %682 = vmatprep.subr.mxu0 0.0
    %683 = vmatpush1.msra.mxu0 0.0
    %684 = vmatprep.subr.mxu0 0.0
    %685 = vmatpush1.msra.mxu0 0.0
    %686 = vmatprep.subr.mxu0 0.0
    %687 = vmatpush1.msra.mxu0 0.0
    %688 = vmatprep.subr.mxu0 0.0
    %689 = vmatpush1.msra.mxu0 0.0
    %690 = vmatprep.subr.mxu0 0.0
    %691 = vmatpush1.msra.mxu0 0.0
    %692 = vmatprep.subr.mxu0 0.0
    %693 = vmatpush1.msra.mxu0 0.0
    %694 = vmatprep.subr.mxu0 0.0
    %695 = vmatpush1.msra.mxu0 0.0
    %696 = vmatprep.subr.mxu0 0.0
    %697 = vmatpush1.msra.mxu0 0.0
    %698 = vmatprep.subr.mxu0 0.0
    %699 = vmatpush1.msra.mxu0 0.0
    %700 = vmatprep.subr.mxu0 0.0
    %701 = vmatpush1.msra.mxu0 0.0
    %702 = vmatprep.subr.mxu0 0.0
    %703 = vmatpush1.msra.mxu0 0.0
    %704 = vmatprep.mubr.f32.mxu0 0.0
    %705 = vmatmul.mubr.f32.gmra.mrb[0].mxu0 %v620
    %v706 = vpop.f32.mrb[0].mxu0
    %v707 = vadd.f32 0.0, %v706
    %v708 = vpop.f32.mrb[0].mxu0
    %709 = vdwg.mxu0
    %v710 = vadd.f32 %v623, %v707
    %v711 = vtanh.pop %v710
    %712 = vst [vmem:[%s622] sm:$0xff] %v711
    %s713 = scalar_lea.vmem [#allocation2], 40
    %v714 = vld [vmem:[%s713] sm:$0xff]
    %v715 = vld [vmem:[#allocation9] sm:$0xff]
    %v716 = vld [vmem:[#allocation9 + $0x8] sm:$0xff]
    %v717 = vld [vmem:[#allocation9 + $0x10] sm:$0xff]
    %v718 = vld [vmem:[#allocation9 + $0x18] sm:$0xff]
    %v719 = vld [vmem:[#allocation9 + $0x20] sm:$0xff]
    %v720 = vld [vmem:[#allocation9 + $0x28] sm:$0xff]
    %v721 = vld [vmem:[#allocation9 + $0x30] sm:$0xff]
    %v722 = vld [vmem:[#allocation9 + $0x38] sm:$0xff]
    %v723 = vld [vmem:[#allocation9 + $0x40] sm:$0xff]
    %v724 = vld [vmem:[#allocation9 + $0x48] sm:$0xff]
    %v725 = vld [vmem:[#allocation9 + $0x50] sm:$0xff]
    %v726 = vld [vmem:[#allocation9 + $0x58] sm:$0xff]
    %v727 = vld [vmem:[#allocation9 + $0x60] sm:$0xff]
    %v728 = vld [vmem:[#allocation9 + $0x68] sm:$0xff]
    %v729 = vld [vmem:[#allocation9 + $0x70] sm:$0xff]
    %v730 = vld [vmem:[#allocation9 + $0x78] sm:$0xff]
    %731 = vmatprep.subr.mxu0 0.0
    %732 = vmatpush1.msra.mxu0 %v715
    %733 = vmatprep.subr.mxu0 0.0
    %734 = vmatpush1.msra.mxu0 %v716
    %735 = vmatprep.subr.mxu0 0.0
    %736 = vmatpush1.msra.mxu0 %v717
    %737 = vmatprep.subr.mxu0 0.0
    %738 = vmatpush1.msra.mxu0 %v718
    %739 = vmatprep.subr.mxu0 0.0
    %740 = vmatpush1.msra.mxu0 %v719
    %741 = vmatprep.subr.mxu0 0.0
    %742 = vmatpush1.msra.mxu0 %v720
    %743 = vmatprep.subr.mxu0 0.0
    %744 = vmatpush1.msra.mxu0 %v721
    %745 = vmatprep.subr.mxu0 0.0
    %746 = vmatpush1.msra.mxu0 %v722
    %747 = vmatprep.subr.mxu0 0.0
    %748 = vmatpush1.msra.mxu0 %v723
    %749 = vmatprep.subr.mxu0 0.0
    %750 = vmatpush1.msra.mxu0 %v724
    %751 = vmatprep.subr.mxu0 0.0
    %752 = vmatpush1.msra.mxu0 %v725
    %753 = vmatprep.subr.mxu0 0.0
    %754 = vmatpush1.msra.mxu0 %v726
    %755 = vmatprep.subr.mxu0 0.0
    %756 = vmatpush1.msra.mxu0 %v727
    %757 = vmatprep.subr.mxu0 0.0
    %758 = vmatpush1.msra.mxu0 %v728
    %759 = vmatprep.subr.mxu0 0.0
    %760 = vmatpush1.msra.mxu0 %v729
    %761 = vmatprep.subr.mxu0 0.0
    %762 = vmatpush1.msra.mxu0 %v730
    %763 = vmatprep.subr.mxu0 0.0
    %764 = vmatpush1.msra.mxu0 0.0
    %765 = vmatprep.subr.mxu0 0.0
    %766 = vmatpush1.msra.mxu0 0.0
    %767 = vmatprep.subr.mxu0 0.0
    %768 = vmatpush1.msra.mxu0 0.0
    %769 = vmatprep.subr.mxu0 0.0
    %770 = vmatpush1.msra.mxu0 0.0
    %771 = vmatprep.subr.mxu0 0.0
    %772 = vmatpush1.msra.mxu0 0.0
    %773 = vmatprep.subr.mxu0 0.0
    %774 = vmatpush1.msra.mxu0 0.0
    %775 = vmatprep.subr.mxu0 0.0
    %776 = vmatpush1.msra.mxu0 0.0
    %777 = vmatprep.subr.mxu0 0.0
    %778 = vmatpush1.msra.mxu0 0.0
    %779 = vmatprep.subr.mxu0 0.0
    %780 = vmatpush1.msra.mxu0 0.0
    %781 = vmatprep.subr.mxu0 0.0
    %782 = vmatpush1.msra.mxu0 0.0
    %783 = vmatprep.subr.mxu0 0.0
    %784 = vmatpush1.msra.mxu0 0.0
    %785 = vmatprep.subr.mxu0 0.0
    %786 = vmatpush1.msra.mxu0 0.0
    %787 = vmatprep.subr.mxu0 0.0
    %788 = vmatpush1.msra.mxu0 0.0
    %789 = vmatprep.subr.mxu0 0.0
    %790 = vmatpush1.msra.mxu0 0.0
    %791 = vmatprep.subr.mxu0 0.0
    %792 = vmatpush1.msra.mxu0 0.0
    %793 = vmatprep.subr.mxu0 0.0
    %794 = vmatpush1.msra.mxu0 0.0
    %795 = vmatprep.mubr.f32.mxu0 0.0
    %796 = vmatmul.mubr.f32.gmra.mrb[0].mxu0 %v711
    %v797 = vpop.f32.mrb[0].mxu0
    %v798 = vadd.f32 0.0, %v797
    %v799 = vpop.f32.mrb[0].mxu0
    %800 = vdwg.mxu0
    %v801 = vadd.f32 %v714, %v798
    %v802 = vtanh.pop %v801
    %803 = vst [vmem:[%s713] sm:$0xff] %v802
    %s804 = scalar_lea.vmem [#allocation2], 48
    %v805 = vld [vmem:[%s804] sm:$0xff]
    %v806 = vld [vmem:[#allocation9] sm:$0xff]
    %v807 = vld [vmem:[#allocation9 + $0x8] sm:$0xff]
    %v808 = vld [vmem:[#allocation9 + $0x10] sm:$0xff]
    %v809 = vld [vmem:[#allocation9 + $0x18] sm:$0xff]
    %v810 = vld [vmem:[#allocation9 + $0x20] sm:$0xff]
    %v811 = vld [vmem:[#allocation9 + $0x28] sm:$0xff]
    %v812 = vld [vmem:[#allocation9 + $0x30] sm:$0xff]
    %v813 = vld [vmem:[#allocation9 + $0x38] sm:$0xff]
    %v814 = vld [vmem:[#allocation9 + $0x40] sm:$0xff]
    %v815 = vld [vmem:[#allocation9 + $0x48] sm:$0xff]
    %v816 = vld [vmem:[#allocation9 + $0x50] sm:$0xff]
    %v817 = vld [vmem:[#allocation9 + $0x58] sm:$0xff]
    %v818 = vld [vmem:[#allocation9 + $0x60] sm:$0xff]
    %v819 = vld [vmem:[#allocation9 + $0x68] sm:$0xff]
    %v820 = vld [vmem:[#allocation9 + $0x70] sm:$0xff]
    %v821 = vld [vmem:[#allocation9 + $0x78] sm:$0xff]
    %822 = vmatprep.subr.mxu0 0.0
    %823 = vmatpush1.msra.mxu0 %v806
    %824 = vmatprep.subr.mxu0 0.0
    %825 = vmatpush1.msra.mxu0 %v807
    %826 = vmatprep.subr.mxu0 0.0
    %827 = vmatpush1.msra.mxu0 %v808
    %828 = vmatprep.subr.mxu0 0.0
    %829 = vmatpush1.msra.mxu0 %v809
    %830 = vmatprep.subr.mxu0 0.0
    %831 = vmatpush1.msra.mxu0 %v810
    %832 = vmatprep.subr.mxu0 0.0
    %833 = vmatpush1.msra.mxu0 %v811
    %834 = vmatprep.subr.mxu0 0.0
    %835 = vmatpush1.msra.mxu0 %v812
    %836 = vmatprep.subr.mxu0 0.0
    %837 = vmatpush1.msra.mxu0 %v813
    %838 = vmatprep.subr.mxu0 0.0
    %839 = vmatpush1.msra.mxu0 %v814
    %840 = vmatprep.subr.mxu0 0.0
    %841 = vmatpush1.msra.mxu0 %v815
    %842 = vmatprep.subr.mxu0 0.0
    %843 = vmatpush1.msra.mxu0 %v816
    %844 = vmatprep.subr.mxu0 0.0
    %845 = vmatpush1.msra.mxu0 %v817
    %846 = vmatprep.subr.mxu0 0.0
    %847 = vmatpush1.msra.mxu0 %v818
    %848 = vmatprep.subr.mxu0 0.0
    %849 = vmatpush1.msra.mxu0 %v819
    %850 = vmatprep.subr.mxu0 0.0
    %851 = vmatpush1.msra.mxu0 %v820
    %852 = vmatprep.subr.mxu0 0.0
    %853 = vmatpush1.msra.mxu0 %v821
    %854 = vmatprep.subr.mxu0 0.0
    %855 = vmatpush1.msra.mxu0 0.0
    %856 = vmatprep.subr.mxu0 0.0
    %857 = vmatpush1.msra.mxu0 0.0
    %858 = vmatprep.subr.mxu0 0.0
    %859 = vmatpush1.msra.mxu0 0.0
    %860 = vmatprep.subr.mxu0 0.0
    %861 = vmatpush1.msra.mxu0 0.0
    %862 = vmatprep.subr.mxu0 0.0
    %863 = vmatpush1.msra.mxu0 0.0
    %864 = vmatprep.subr.mxu0 0.0
    %865 = vmatpush1.msra.mxu0 0.0
    %866 = vmatprep.subr.mxu0 0.0
    %867 = vmatpush1.msra.mxu0 0.0
    %868 = vmatprep.subr.mxu0 0.0
    %869 = vmatpush1.msra.mxu0 0.0
    %870 = vmatprep.subr.mxu0 0.0
    %871 = vmatpush1.msra.mxu0 0.0
    %872 = vmatprep.subr.mxu0 0.0
    %873 = vmatpush1.msra.mxu0 0.0
    %874 = vmatprep.subr.mxu0 0.0
    %875 = vmatpush1.msra.mxu0 0.0
    %876 = vmatprep.subr.mxu0 0.0
    %877 = vmatpush1.msra.mxu0 0.0
    %878 = vmatprep.subr.mxu0 0.0
    %879 = vmatpush1.msra.mxu0 0.0
    %880 = vmatprep.subr.mxu0 0.0
    %881 = vmatpush1.msra.mxu0 0.0
    %882 = vmatprep.subr.mxu0 0.0
    %883 = vmatpush1.msra.mxu0 0.0
    %884 = vmatprep.subr.mxu0 0.0
    %885 = vmatpush1.msra.mxu0 0.0
    %886 = vmatprep.mubr.f32.mxu0 0.0
    %887 = vmatmul.mubr.f32.gmra.mrb[0].mxu0 %v802
    %v888 = vpop.f32.mrb[0].mxu0
    %v889 = vadd.f32 0.0, %v888
    %v890 = vpop.f32.mrb[0].mxu0
    %891 = vdwg.mxu0
    %v892 = vadd.f32 %v805, %v889
    %v893 = vtanh.pop %v892
    %894 = vst [vmem:[%s804] sm:$0xff] %v893
    %s895 = scalar_lea.vmem [#allocation2], 56
    %v896 = vld [vmem:[%s895] sm:$0xff]
    %v897 = vld [vmem:[#allocation9] sm:$0xff]
    %v898 = vld [vmem:[#allocation9 + $0x8] sm:$0xff]
    %v899 = vld [vmem:[#allocation9 + $0x10] sm:$0xff]
    %v900 = vld [vmem:[#allocation9 + $0x18] sm:$0xff]
    %v901 = vld [vmem:[#allocation9 + $0x20] sm:$0xff]
    %v902 = vld [vmem:[#allocation9 + $0x28] sm:$0xff]
    %v903 = vld [vmem:[#allocation9 + $0x30] sm:$0xff]
    %v904 = vld [vmem:[#allocation9 + $0x38] sm:$0xff]
    %v905 = vld [vmem:[#allocation9 + $0x40] sm:$0xff]
    %v906 = vld [vmem:[#allocation9 + $0x48] sm:$0xff]
    %v907 = vld [vmem:[#allocation9 + $0x50] sm:$0xff]
    %v908 = vld [vmem:[#allocation9 + $0x58] sm:$0xff]
    %v909 = vld [vmem:[#allocation9 + $0x60] sm:$0xff]
    %v910 = vld [vmem:[#allocation9 + $0x68] sm:$0xff]
    %v911 = vld [vmem:[#allocation9 + $0x70] sm:$0xff]
    %v912 = vld [vmem:[#allocation9 + $0x78] sm:$0xff]
    %913 = vmatprep.subr.mxu0 0.0
    %914 = vmatpush1.msra.mxu0 %v897
    %915 = vmatprep.subr.mxu0 0.0
    %916 = vmatpush1.msra.mxu0 %v898
    %917 = vmatprep.subr.mxu0 0.0
    %918 = vmatpush1.msra.mxu0 %v899
    %919 = vmatprep.subr.mxu0 0.0
    %920 = vmatpush1.msra.mxu0 %v900
    %921 = vmatprep.subr.mxu0 0.0
    %922 = vmatpush1.msra.mxu0 %v901
    %923 = vmatprep.subr.mxu0 0.0
    %924 = vmatpush1.msra.mxu0 %v902
    %925 = vmatprep.subr.mxu0 0.0
    %926 = vmatpush1.msra.mxu0 %v903
    %927 = vmatprep.subr.mxu0 0.0
    %928 = vmatpush1.msra.mxu0 %v904
    %929 = vmatprep.subr.mxu0 0.0
    %930 = vmatpush1.msra.mxu0 %v905
    %931 = vmatprep.subr.mxu0 0.0
    %932 = vmatpush1.msra.mxu0 %v906
    %933 = vmatprep.subr.mxu0 0.0
    %934 = vmatpush1.msra.mxu0 %v907
    %935 = vmatprep.subr.mxu0 0.0
    %936 = vmatpush1.msra.mxu0 %v908
    %937 = vmatprep.subr.mxu0 0.0
    %938 = vmatpush1.msra.mxu0 %v909
    %939 = vmatprep.subr.mxu0 0.0
    %940 = vmatpush1.msra.mxu0 %v910
    %941 = vmatprep.subr.mxu0 0.0
    %942 = vmatpush1.msra.mxu0 %v911
    %943 = vmatprep.subr.mxu0 0.0
    %944 = vmatpush1.msra.mxu0 %v912
    %945 = vmatprep.subr.mxu0 0.0
    %946 = vmatpush1.msra.mxu0 0.0
    %947 = vmatprep.subr.mxu0 0.0
    %948 = vmatpush1.msra.mxu0 0.0
    %949 = vmatprep.subr.mxu0 0.0
    %950 = vmatpush1.msra.mxu0 0.0
    %951 = vmatprep.subr.mxu0 0.0
    %952 = vmatpush1.msra.mxu0 0.0
    %953 = vmatprep.subr.mxu0 0.0
    %954 = vmatpush1.msra.mxu0 0.0
    %955 = vmatprep.subr.mxu0 0.0
    %956 = vmatpush1.msra.mxu0 0.0
    %957 = vmatprep.subr.mxu0 0.0
    %958 = vmatpush1.msra.mxu0 0.0
    %959 = vmatprep.subr.mxu0 0.0
    %960 = vmatpush1.msra.mxu0 0.0
    %961 = vmatprep.subr.mxu0 0.0
    %962 = vmatpush1.msra.mxu0 0.0
    %963 = vmatprep.subr.mxu0 0.0
    %964 = vmatpush1.msra.mxu0 0.0
    %965 = vmatprep.subr.mxu0 0.0
    %966 = vmatpush1.msra.mxu0 0.0
    %967 = vmatprep.subr.mxu0 0.0
    %968 = vmatpush1.msra.mxu0 0.0
    %969 = vmatprep.subr.mxu0 0.0
    %970 = vmatpush1.msra.mxu0 0.0
    %971 = vmatprep.subr.mxu0 0.0
    %972 = vmatpush1.msra.mxu0 0.0
    %973 = vmatprep.subr.mxu0 0.0
    %974 = vmatpush1.msra.mxu0 0.0
    %975 = vmatprep.subr.mxu0 0.0
    %976 = vmatpush1.msra.mxu0 0.0
    %977 = vmatprep.mubr.f32.mxu0 0.0
    %978 = vmatmul.mubr.f32.gmra.mrb[0].mxu0 %v893
    %v979 = vpop.f32.mrb[0].mxu0
    %v980 = vadd.f32 0.0, %v979
    %v981 = vpop.f32.mrb[0].mxu0
    %982 = vdwg.mxu0
    %v983 = vadd.f32 %v896, %v980
    %v984 = vtanh.pop %v983
    %985 = vst [vmem:[%s895] sm:$0xff] %v984
    %v986 = vld [vmem:[#allocation2] sm:$0xff]
    %v987 = vld [vmem:[#allocation2 + $0x8] sm:$0xff]
    %v988 = vld [vmem:[#allocation2 + $0x10] sm:$0xff]
    %v989 = vld [vmem:[#allocation2 + $0x18] sm:$0xff]
    %v990 = vld [vmem:[#allocation2 + $0x20] sm:$0xff]
    %v991 = vld [vmem:[#allocation2 + $0x28] sm:$0xff]
    %v992 = vld [vmem:[#allocation2 + $0x30] sm:$0xff]
    %v993 = vld [vmem:[#allocation2 + $0x38] sm:$0xff]
    %v994 = vld [vmem:[#allocation10] sm:$0xff]
    %v995 = vld [vmem:[#allocation10 + $0x8] sm:$0xff]
    %v996 = vld [vmem:[#allocation10 + $0x10] sm:$0xff]
    %v997 = vld [vmem:[#allocation10 + $0x18] sm:$0xff]
    %v998 = vld [vmem:[#allocation10 + $0x20] sm:$0xff]
    %v999 = vld [vmem:[#allocation10 + $0x28] sm:$0xff]
    %v1000 = vld [vmem:[#allocation10 + $0x30] sm:$0xff]
    %v1001 = vld [vmem:[#allocation10 + $0x38] sm:$0xff]
    %v1002 = vld [vmem:[#allocation10 + $0x40] sm:$0xff]
    %v1003 = vld [vmem:[#allocation10 + $0x48] sm:$0xff]
    %v1004 = vld [vmem:[#allocation10 + $0x50] sm:$0xff]
    %v1005 = vld [vmem:[#allocation10 + $0x58] sm:$0xff]
    %v1006 = vld [vmem:[#allocation10 + $0x60] sm:$0xff]
    %v1007 = vld [vmem:[#allocation10 + $0x68] sm:$0xff]
    %v1008 = vld [vmem:[#allocation10 + $0x70] sm:$0xff]
    %v1009 = vld [vmem:[#allocation10 + $0x78] sm:$0xff]
    %v1010 = vld [vmem:[%s6] sm:$0x1]
    %v1012 = vlaneseq
    %v1013 = vshrl.u32 %v1012, 7
    %v1014 = vsub.s32 0, %v1013
    %v1015 = vrot.slane %v1010, %v1014
    %1017 = vmatprep.subr.mxu0 0.0
    %1018 = vmatpush1.msra.mxu0 %v994
    %1019 = vmatprep.subr.mxu0 0.0
    %1020 = vmatpush1.msra.mxu0 %v995
    %1021 = vmatprep.subr.mxu0 0.0
    %1022 = vmatpush1.msra.mxu0 %v996
    %1023 = vmatprep.subr.mxu0 0.0
    %1024 = vmatpush1.msra.mxu0 %v997
    %1025 = vmatprep.subr.mxu0 0.0
    %1026 = vmatpush1.msra.mxu0 %v998
    %1027 = vmatprep.subr.mxu0 0.0
    %1028 = vmatpush1.msra.mxu0 %v999
    %1029 = vmatprep.subr.mxu0 0.0
    %1030 = vmatpush1.msra.mxu0 %v1000
    %1031 = vmatprep.subr.mxu0 0.0
    %1032 = vmatpush1.msra.mxu0 %v1001
    %1033 = vmatprep.subr.mxu0 0.0
    %1034 = vmatpush1.msra.mxu0 %v1002
    %1035 = vmatprep.subr.mxu0 0.0
    %1036 = vmatpush1.msra.mxu0 %v1003
    %1037 = vmatprep.subr.mxu0 0.0
    %1038 = vmatpush1.msra.mxu0 %v1004
    %1039 = vmatprep.subr.mxu0 0.0
    %1040 = vmatpush1.msra.mxu0 %v1005
    %1041 = vmatprep.subr.mxu0 0.0
    %1042 = vmatpush1.msra.mxu0 %v1006
    %1043 = vmatprep.subr.mxu0 0.0
    %1044 = vmatpush1.msra.mxu0 %v1007
    %1045 = vmatprep.subr.mxu0 0.0
    %1046 = vmatpush1.msra.mxu0 %v1008
    %1047 = vmatprep.subr.mxu0 0.0
    %1048 = vmatpush1.msra.mxu0 %v1009
    %1049 = vmatprep.subr.mxu0 0.0
    %1050 = vmatpush1.msra.mxu0 0.0
    %1051 = vmatprep.subr.mxu0 0.0
    %1052 = vmatpush1.msra.mxu0 0.0
    %1053 = vmatprep.subr.mxu0 0.0
    %1054 = vmatpush1.msra.mxu0 0.0
    %1055 = vmatprep.subr.mxu0 0.0
    %1056 = vmatpush1.msra.mxu0 0.0
    %1057 = vmatprep.subr.mxu0 0.0
    %1058 = vmatpush1.msra.mxu0 0.0
    %1059 = vmatprep.subr.mxu0 0.0
    %1060 = vmatpush1.msra.mxu0 0.0
    %1061 = vmatprep.subr.mxu0 0.0
    %1062 = vmatpush1.msra.mxu0 0.0
    %1063 = vmatprep.subr.mxu0 0.0
    %1064 = vmatpush1.msra.mxu0 0.0
    %1065 = vmatprep.subr.mxu0 0.0
    %1066 = vmatpush1.msra.mxu0 0.0
    %1067 = vmatprep.subr.mxu0 0.0
    %1068 = vmatpush1.msra.mxu0 0.0
    %1069 = vmatprep.subr.mxu0 0.0
    %1070 = vmatpush1.msra.mxu0 0.0
    %1071 = vmatprep.subr.mxu0 0.0
    %1072 = vmatpush1.msra.mxu0 0.0
    %1073 = vmatprep.subr.mxu0 0.0
    %1074 = vmatpush1.msra.mxu0 0.0
    %1075 = vmatprep.subr.mxu0 0.0
    %1076 = vmatpush1.msra.mxu0 0.0
    %1077 = vmatprep.subr.mxu0 0.0
    %1078 = vmatpush1.msra.mxu0 0.0
    %1079 = vmatprep.subr.mxu0 0.0
    %1080 = vmatpush1.msra.mxu0 0.0
    %1081 = vmatprep.mubr.f32.mxu0 0.0
    %1082 = vmatmul.mubr.f32.gmra.mrb[0].mxu0 %v986
    %v1083 = vpop.f32.mrb[0].mxu0
    %v1084 = vadd.f32 %v1015, %v1083
    %v1085 = vpop.f32.mrb[0].mxu0
    %1086 = vmatprep.mubr.f32.mxu0 0.0
    %1087 = vmatmul.mubr.f32.gmra.mrb[0].mxu0 %v987
    %v1088 = vpop.f32.mrb[0].mxu0
    %v1089 = vadd.f32 %v1015, %v1088
    %v1090 = vpop.f32.mrb[0].mxu0
    %1091 = vmatprep.mubr.f32.mxu0 0.0
    %1092 = vmatmul.mubr.f32.gmra.mrb[0].mxu0 %v988
    %v1093 = vpop.f32.mrb[0].mxu0
    %v1094 = vadd.f32 %v1015, %v1093
    %v1095 = vpop.f32.mrb[0].mxu0
    %1096 = vmatprep.mubr.f32.mxu0 0.0
    %1097 = vmatmul.mubr.f32.gmra.mrb[0].mxu0 %v989
    %v1098 = vpop.f32.mrb[0].mxu0
    %v1099 = vadd.f32 %v1015, %v1098
    %v1100 = vpop.f32.mrb[0].mxu0
    %1101 = vmatprep.mubr.f32.mxu0 0.0
    %1102 = vmatmul.mubr.f32.gmra.mrb[0].mxu0 %v990
    %v1103 = vpop.f32.mrb[0].mxu0
    %v1104 = vadd.f32 %v1015, %v1103
    %v1105 = vpop.f32.mrb[0].mxu0
    %1106 = vmatprep.mubr.f32.mxu0 0.0
    %1107 = vmatmul.mubr.f32.gmra.mrb[0].mxu0 %v991
    %v1108 = vpop.f32.mrb[0].mxu0
    %v1109 = vadd.f32 %v1015, %v1108
    %v1110 = vpop.f32.mrb[0].mxu0
    %1111 = vmatprep.mubr.f32.mxu0 0.0
    %1112 = vmatmul.mubr.f32.gmra.mrb[0].mxu0 %v992
    %v1113 = vpop.f32.mrb[0].mxu0
    %v1114 = vadd.f32 %v1015, %v1113
    %v1115 = vpop.f32.mrb[0].mxu0
    %1116 = vmatprep.mubr.f32.mxu0 0.0
    %1117 = vmatmul.mubr.f32.gmra.mrb[0].mxu0 %v993
    %v1118 = vpop.f32.mrb[0].mxu0
    %v1119 = vadd.f32 %v1015, %v1118
    %v1120 = vpop.f32.mrb[0].mxu0
    %1121 = vdwg.mxu0
    %1122 = vst [vmem:[#allocation3] sm:$0xff] %v1084
    %1123 = vst [vmem:[#allocation3 + $0x8] sm:$0xff] %v1089
    %1124 = vst [vmem:[#allocation3 + $0x10] sm:$0xff] %v1094
    %1125 = vst [vmem:[#allocation3 + $0x18] sm:$0xff] %v1099
    %1126 = vst [vmem:[#allocation3 + $0x20] sm:$0xff] %v1104
    %1127 = vst [vmem:[#allocation3 + $0x28] sm:$0xff] %v1109
    %1128 = vst [vmem:[#allocation3 + $0x30] sm:$0xff] %v1114
    %1129 = vst [vmem:[#allocation3 + $0x38] sm:$0xff] %v1119
    %v1130 = vld [vmem:[#allocation3] sm:$0xff]
    %v1131 = vld [vmem:[#allocation12] sm:$0xff]
    %v1132 = vld [vmem:[#allocation12 + $0x8] sm:$0xff]
    %v1133 = vld [vmem:[#allocation12 + $0x10] sm:$0xff]
    %v1134 = vld [vmem:[#allocation12 + $0x18] sm:$0xff]
    %v1135 = vld [vmem:[#allocation12 + $0x20] sm:$0xff]
    %v1136 = vld [vmem:[#allocation12 + $0x28] sm:$0xff]
    %v1137 = vld [vmem:[#allocation12 + $0x30] sm:$0xff]
    %v1138 = vld [vmem:[#allocation12 + $0x38] sm:$0xff]
    %v1139 = vld [vmem:[#allocation12 + $0x40] sm:$0xff]
    %v1140 = vld [vmem:[#allocation12 + $0x48] sm:$0xff]
    %v1141 = vld [vmem:[#allocation12 + $0x50] sm:$0xff]
    %v1142 = vld [vmem:[#allocation12 + $0x58] sm:$0xff]
    %v1143 = vld [vmem:[#allocation12 + $0x60] sm:$0xff]
    %v1144 = vld [vmem:[#allocation12 + $0x68] sm:$0xff]
    %v1145 = vld [vmem:[#allocation12 + $0x70] sm:$0xff]
    %v1146 = vld [vmem:[#allocation12 + $0x78] sm:$0xff]
    %1147 = vmatprep.subr.mxu0 0.0
    %1148 = vmatpush1.msra.mxu0 %v1131
    %1149 = vmatprep.subr.mxu0 0.0
    %1150 = vmatpush1.msra.mxu0 %v1132
    %1151 = vmatprep.subr.mxu0 0.0
    %1152 = vmatpush1.msra.mxu0 %v1133
    %1153 = vmatprep.subr.mxu0 0.0
    %1154 = vmatpush1.msra.mxu0 %v1134
    %1155 = vmatprep.subr.mxu0 0.0
    %1156 = vmatpush1.msra.mxu0 %v1135
    %1157 = vmatprep.subr.mxu0 0.0
    %1158 = vmatpush1.msra.mxu0 %v1136
    %1159 = vmatprep.subr.mxu0 0.0
    %1160 = vmatpush1.msra.mxu0 %v1137
    %1161 = vmatprep.subr.mxu0 0.0
    %1162 = vmatpush1.msra.mxu0 %v1138
    %1163 = vmatprep.subr.mxu0 0.0
    %1164 = vmatpush1.msra.mxu0 %v1139
    %1165 = vmatprep.subr.mxu0 0.0
    %1166 = vmatpush1.msra.mxu0 %v1140
    %1167 = vmatprep.subr.mxu0 0.0
    %1168 = vmatpush1.msra.mxu0 %v1141
    %1169 = vmatprep.subr.mxu0 0.0
    %1170 = vmatpush1.msra.mxu0 %v1142
    %1171 = vmatprep.subr.mxu0 0.0
    %1172 = vmatpush1.msra.mxu0 %v1143
    %1173 = vmatprep.subr.mxu0 0.0
    %1174 = vmatpush1.msra.mxu0 %v1144
    %1175 = vmatprep.subr.mxu0 0.0
    %1176 = vmatpush1.msra.mxu0 %v1145
    %1177 = vmatprep.subr.mxu0 0.0
    %1178 = vmatpush1.msra.mxu0 %v1146
    %1179 = vmatprep.subr.mxu0 0.0
    %1180 = vmatpush1.msra.mxu0 0.0
    %1181 = vmatprep.subr.mxu0 0.0
    %1182 = vmatpush1.msra.mxu0 0.0
    %1183 = vmatprep.subr.mxu0 0.0
    %1184 = vmatpush1.msra.mxu0 0.0
    %1185 = vmatprep.subr.mxu0 0.0
    %1186 = vmatpush1.msra.mxu0 0.0
    %1187 = vmatprep.subr.mxu0 0.0
    %1188 = vmatpush1.msra.mxu0 0.0
    %1189 = vmatprep.subr.mxu0 0.0
    %1190 = vmatpush1.msra.mxu0 0.0
    %1191 = vmatprep.subr.mxu0 0.0
    %1192 = vmatpush1.msra.mxu0 0.0
    %1193 = vmatprep.subr.mxu0 0.0
    %1194 = vmatpush1.msra.mxu0 0.0
    %1195 = vmatprep.subr.mxu0 0.0
    %1196 = vmatpush1.msra.mxu0 0.0
    %1197 = vmatprep.subr.mxu0 0.0
    %1198 = vmatpush1.msra.mxu0 0.0
    %1199 = vmatprep.subr.mxu0 0.0
    %1200 = vmatpush1.msra.mxu0 0.0
    %1201 = vmatprep.subr.mxu0 0.0
    %1202 = vmatpush1.msra.mxu0 0.0
    %1203 = vmatprep.subr.mxu0 0.0
    %1204 = vmatpush1.msra.mxu0 0.0
    %1205 = vmatprep.subr.mxu0 0.0
    %1206 = vmatpush1.msra.mxu0 0.0
    %1207 = vmatprep.subr.mxu0 0.0
    %1208 = vmatpush1.msra.mxu0 0.0
    %1209 = vmatprep.subr.mxu0 0.0
    %1210 = vmatpush1.msra.mxu0 0.0
    %1211 = vmatprep.mubr.f32.mxu0 0.0
    %1212 = vmatmul.mubr.f32.gmra.mrb[0].mxu0 0.0
    %v1213 = vpop.f32.mrb[0].mxu0
    %v1214 = vadd.f32 0.0, %v1213
    %v1215 = vpop.f32.mrb[0].mxu0
    %1216 = vdwg.mxu0
    %v1217 = vadd.f32 %v1130, %v1214
    %v1218 = vtanh.pop %v1217
    %s1219 = scalar_lea.vmem [#allocation3], 8
    %v1220 = vld [vmem:[%s1219] sm:$0xff]
    %1221 = vmatprep.subr.mxu0 0.0
    %1222 = vmatpush1.msra.mxu0 %v1131
    %1223 = vmatprep.subr.mxu0 0.0
    %1224 = vmatpush1.msra.mxu0 %v1132
    %1225 = vmatprep.subr.mxu0 0.0
    %1226 = vmatpush1.msra.mxu0 %v1133
    %1227 = vmatprep.subr.mxu0 0.0
    %1228 = vmatpush1.msra.mxu0 %v1134
    %1229 = vmatprep.subr.mxu0 0.0
    %1230 = vmatpush1.msra.mxu0 %v1135
    %1231 = vmatprep.subr.mxu0 0.0
    %1232 = vmatpush1.msra.mxu0 %v1136
    %1233 = vmatprep.subr.mxu0 0.0
    %1234 = vmatpush1.msra.mxu0 %v1137
    %1235 = vmatprep.subr.mxu0 0.0
    %1236 = vmatpush1.msra.mxu0 %v1138
    %1237 = vmatprep.subr.mxu0 0.0
    %1238 = vmatpush1.msra.mxu0 %v1139
    %1239 = vmatprep.subr.mxu0 0.0
    %1240 = vmatpush1.msra.mxu0 %v1140
    %1241 = vmatprep.subr.mxu0 0.0
    %1242 = vmatpush1.msra.mxu0 %v1141
    %1243 = vmatprep.subr.mxu0 0.0
    %1244 = vmatpush1.msra.mxu0 %v1142
    %1245 = vmatprep.subr.mxu0 0.0
    %1246 = vmatpush1.msra.mxu0 %v1143
    %1247 = vmatprep.subr.mxu0 0.0
    %1248 = vmatpush1.msra.mxu0 %v1144
    %1249 = vmatprep.subr.mxu0 0.0
    %1250 = vmatpush1.msra.mxu0 %v1145
    %1251 = vmatprep.subr.mxu0 0.0
    %1252 = vmatpush1.msra.mxu0 %v1146
    %1253 = vmatprep.subr.mxu0 0.0
    %1254 = vmatpush1.msra.mxu0 0.0
    %1255 = vmatprep.subr.mxu0 0.0
    %1256 = vmatpush1.msra.mxu0 0.0
    %1257 = vmatprep.subr.mxu0 0.0
    %1258 = vmatpush1.msra.mxu0 0.0
    %1259 = vmatprep.subr.mxu0 0.0
    %1260 = vmatpush1.msra.mxu0 0.0
    %1261 = vmatprep.subr.mxu0 0.0
    %1262 = vmatpush1.msra.mxu0 0.0
    %1263 = vmatprep.subr.mxu0 0.0
    %1264 = vmatpush1.msra.mxu0 0.0
    %1265 = vmatprep.subr.mxu0 0.0
    %1266 = vmatpush1.msra.mxu0 0.0
    %1267 = vmatprep.subr.mxu0 0.0
    %1268 = vmatpush1.msra.mxu0 0.0
    %1269 = vmatprep.subr.mxu0 0.0
    %1270 = vmatpush1.msra.mxu0 0.0
    %1271 = vmatprep.subr.mxu0 0.0
    %1272 = vmatpush1.msra.mxu0 0.0
    %1273 = vmatprep.subr.mxu0 0.0
    %1274 = vmatpush1.msra.mxu0 0.0
    %1275 = vmatprep.subr.mxu0 0.0
    %1276 = vmatpush1.msra.mxu0 0.0
    %1277 = vmatprep.subr.mxu0 0.0
    %1278 = vmatpush1.msra.mxu0 0.0
    %1279 = vmatprep.subr.mxu0 0.0
    %1280 = vmatpush1.msra.mxu0 0.0
    %1281 = vmatprep.subr.mxu0 0.0
    %1282 = vmatpush1.msra.mxu0 0.0
    %1283 = vmatprep.subr.mxu0 0.0
    %1284 = vmatpush1.msra.mxu0 0.0
    %1285 = vmatprep.mubr.f32.mxu0 0.0
    %1286 = vmatmul.mubr.f32.gmra.mrb[0].mxu0 %v1218
    %v1287 = vpop.f32.mrb[0].mxu0
    %v1288 = vadd.f32 0.0, %v1287
    %v1289 = vpop.f32.mrb[0].mxu0
    %1290 = vdwg.mxu0
    %v1291 = vadd.f32 %v1220, %v1288
    %v1292 = vtanh.pop %v1291
    %s1293 = scalar_lea.vmem [#allocation3], 16
    %v1294 = vld [vmem:[%s1293] sm:$0xff]
    %1295 = vmatprep.subr.mxu0 0.0
    %1296 = vmatpush1.msra.mxu0 %v1131
    %1297 = vmatprep.subr.mxu0 0.0
    %1298 = vmatpush1.msra.mxu0 %v1132
    %1299 = vmatprep.subr.mxu0 0.0
    %1300 = vmatpush1.msra.mxu0 %v1133
    %1301 = vmatprep.subr.mxu0 0.0
    %1302 = vmatpush1.msra.mxu0 %v1134
    %1303 = vmatprep.subr.mxu0 0.0
    %1304 = vmatpush1.msra.mxu0 %v1135
    %1305 = vmatprep.subr.mxu0 0.0
    %1306 = vmatpush1.msra.mxu0 %v1136
    %1307 = vmatprep.subr.mxu0 0.0
    %1308 = vmatpush1.msra.mxu0 %v1137
    %1309 = vmatprep.subr.mxu0 0.0
    %1310 = vmatpush1.msra.mxu0 %v1138
    %1311 = vmatprep.subr.mxu0 0.0
    %1312 = vmatpush1.msra.mxu0 %v1139
    %1313 = vmatprep.subr.mxu0 0.0
    %1314 = vmatpush1.msra.mxu0 %v1140
    %1315 = vmatprep.subr.mxu0 0.0
    %1316 = vmatpush1.msra.mxu0 %v1141
    %1317 = vmatprep.subr.mxu0 0.0
    %1318 = vmatpush1.msra.mxu0 %v1142
    %1319 = vmatprep.subr.mxu0 0.0
    %1320 = vmatpush1.msra.mxu0 %v1143
    %1321 = vmatprep.subr.mxu0 0.0
    %1322 = vmatpush1.msra.mxu0 %v1144
    %1323 = vmatprep.subr.mxu0 0.0
    %1324 = vmatpush1.msra.mxu0 %v1145
    %1325 = vmatprep.subr.mxu0 0.0
    %1326 = vmatpush1.msra.mxu0 %v1146
    %1327 = vmatprep.subr.mxu0 0.0
    %1328 = vmatpush1.msra.mxu0 0.0
    %1329 = vmatprep.subr.mxu0 0.0
    %1330 = vmatpush1.msra.mxu0 0.0
    %1331 = vmatprep.subr.mxu0 0.0
    %1332 = vmatpush1.msra.mxu0 0.0
    %1333 = vmatprep.subr.mxu0 0.0
    %1334 = vmatpush1.msra.mxu0 0.0
    %1335 = vmatprep.subr.mxu0 0.0
    %1336 = vmatpush1.msra.mxu0 0.0
    %1337 = vmatprep.subr.mxu0 0.0
    %1338 = vmatpush1.msra.mxu0 0.0
    %1339 = vmatprep.subr.mxu0 0.0
    %1340 = vmatpush1.msra.mxu0 0.0
    %1341 = vmatprep.subr.mxu0 0.0
    %1342 = vmatpush1.msra.mxu0 0.0
    %1343 = vmatprep.subr.mxu0 0.0
    %1344 = vmatpush1.msra.mxu0 0.0
    %1345 = vmatprep.subr.mxu0 0.0
    %1346 = vmatpush1.msra.mxu0 0.0
    %1347 = vmatprep.subr.mxu0 0.0
    %1348 = vmatpush1.msra.mxu0 0.0
    %1349 = vmatprep.subr.mxu0 0.0
    %1350 = vmatpush1.msra.mxu0 0.0
    %1351 = vmatprep.subr.mxu0 0.0
    %1352 = vmatpush1.msra.mxu0 0.0
    %1353 = vmatprep.subr.mxu0 0.0
    %1354 = vmatpush1.msra.mxu0 0.0
    %1355 = vmatprep.subr.mxu0 0.0
    %1356 = vmatpush1.msra.mxu0 0.0
    %1357 = vmatprep.subr.mxu0 0.0
    %1358 = vmatpush1.msra.mxu0 0.0
    %1359 = vmatprep.mubr.f32.mxu0 0.0
    %1360 = vmatmul.mubr.f32.gmra.mrb[0].mxu0 %v1292
    %v1361 = vpop.f32.mrb[0].mxu0
    %v1362 = vadd.f32 0.0, %v1361
    %v1363 = vpop.f32.mrb[0].mxu0
    %1364 = vdwg.mxu0
    %v1365 = vadd.f32 %v1294, %v1362
    %v1366 = vtanh.pop %v1365
    %s1367 = scalar_lea.vmem [#allocation3], 24
    %v1368 = vld [vmem:[%s1367] sm:$0xff]
    %1369 = vmatprep.subr.mxu0 0.0
    %1370 = vmatpush1.msra.mxu0 %v1131
    %1371 = vmatprep.subr.mxu0 0.0
    %1372 = vmatpush1.msra.mxu0 %v1132
    %1373 = vmatprep.subr.mxu0 0.0
    %1374 = vmatpush1.msra.mxu0 %v1133
    %1375 = vmatprep.subr.mxu0 0.0
    %1376 = vmatpush1.msra.mxu0 %v1134
    %1377 = vmatprep.subr.mxu0 0.0
    %1378 = vmatpush1.msra.mxu0 %v1135
    %1379 = vmatprep.subr.mxu0 0.0
    %1380 = vmatpush1.msra.mxu0 %v1136
    %1381 = vmatprep.subr.mxu0 0.0
    %1382 = vmatpush1.msra.mxu0 %v1137
    %1383 = vmatprep.subr.mxu0 0.0
    %1384 = vmatpush1.msra.mxu0 %v1138
    %1385 = vmatprep.subr.mxu0 0.0
    %1386 = vmatpush1.msra.mxu0 %v1139
    %1387 = vmatprep.subr.mxu0 0.0
    %1388 = vmatpush1.msra.mxu0 %v1140
    %1389 = vmatprep.subr.mxu0 0.0
    %1390 = vmatpush1.msra.mxu0 %v1141
    %1391 = vmatprep.subr.mxu0 0.0
    %1392 = vmatpush1.msra.mxu0 %v1142
    %1393 = vmatprep.subr.mxu0 0.0
    %1394 = vmatpush1.msra.mxu0 %v1143
    %1395 = vmatprep.subr.mxu0 0.0
    %1396 = vmatpush1.msra.mxu0 %v1144
    %1397 = vmatprep.subr.mxu0 0.0
    %1398 = vmatpush1.msra.mxu0 %v1145
    %1399 = vmatprep.subr.mxu0 0.0
    %1400 = vmatpush1.msra.mxu0 %v1146
    %1401 = vmatprep.subr.mxu0 0.0
    %1402 = vmatpush1.msra.mxu0 0.0
    %1403 = vmatprep.subr.mxu0 0.0
    %1404 = vmatpush1.msra.mxu0 0.0
    %1405 = vmatprep.subr.mxu0 0.0
    %1406 = vmatpush1.msra.mxu0 0.0
    %1407 = vmatprep.subr.mxu0 0.0
    %1408 = vmatpush1.msra.mxu0 0.0
    %1409 = vmatprep.subr.mxu0 0.0
    %1410 = vmatpush1.msra.mxu0 0.0
    %1411 = vmatprep.subr.mxu0 0.0
    %1412 = vmatpush1.msra.mxu0 0.0
    %1413 = vmatprep.subr.mxu0 0.0
    %1414 = vmatpush1.msra.mxu0 0.0
    %1415 = vmatprep.subr.mxu0 0.0
    %1416 = vmatpush1.msra.mxu0 0.0
    %1417 = vmatprep.subr.mxu0 0.0
    %1418 = vmatpush1.msra.mxu0 0.0
    %1419 = vmatprep.subr.mxu0 0.0
    %1420 = vmatpush1.msra.mxu0 0.0
    %1421 = vmatprep.subr.mxu0 0.0
    %1422 = vmatpush1.msra.mxu0 0.0
    %1423 = vmatprep.subr.mxu0 0.0
    %1424 = vmatpush1.msra.mxu0 0.0
    %1425 = vmatprep.subr.mxu0 0.0
    %1426 = vmatpush1.msra.mxu0 0.0
    %1427 = vmatprep.subr.mxu0 0.0
    %1428 = vmatpush1.msra.mxu0 0.0
    %1429 = vmatprep.subr.mxu0 0.0
    %1430 = vmatpush1.msra.mxu0 0.0
    %1431 = vmatprep.subr.mxu0 0.0
    %1432 = vmatpush1.msra.mxu0 0.0
    %1433 = vmatprep.mubr.f32.mxu0 0.0
    %1434 = vmatmul.mubr.f32.gmra.mrb[0].mxu0 %v1366
    %v1435 = vpop.f32.mrb[0].mxu0
    %v1436 = vadd.f32 0.0, %v1435
    %v1437 = vpop.f32.mrb[0].mxu0
    %1438 = vdwg.mxu0
    %v1439 = vadd.f32 %v1368, %v1436
    %v1440 = vtanh.pop %v1439
    %s1441 = scalar_lea.vmem [#allocation3], 32
    %v1442 = vld [vmem:[%s1441] sm:$0xff]
    %1443 = vmatprep.subr.mxu0 0.0
    %1444 = vmatpush1.msra.mxu0 %v1131
    %1445 = vmatprep.subr.mxu0 0.0
    %1446 = vmatpush1.msra.mxu0 %v1132
    %1447 = vmatprep.subr.mxu0 0.0
    %1448 = vmatpush1.msra.mxu0 %v1133
    %1449 = vmatprep.subr.mxu0 0.0
    %1450 = vmatpush1.msra.mxu0 %v1134
    %1451 = vmatprep.subr.mxu0 0.0
    %1452 = vmatpush1.msra.mxu0 %v1135
    %1453 = vmatprep.subr.mxu0 0.0
    %1454 = vmatpush1.msra.mxu0 %v1136
    %1455 = vmatprep.subr.mxu0 0.0
    %1456 = vmatpush1.msra.mxu0 %v1137
    %1457 = vmatprep.subr.mxu0 0.0
    %1458 = vmatpush1.msra.mxu0 %v1138
    %1459 = vmatprep.subr.mxu0 0.0
    %1460 = vmatpush1.msra.mxu0 %v1139
    %1461 = vmatprep.subr.mxu0 0.0
    %1462 = vmatpush1.msra.mxu0 %v1140
    %1463 = vmatprep.subr.mxu0 0.0
    %1464 = vmatpush1.msra.mxu0 %v1141
    %1465 = vmatprep.subr.mxu0 0.0
    %1466 = vmatpush1.msra.mxu0 %v1142
    %1467 = vmatprep.subr.mxu0 0.0
    %1468 = vmatpush1.msra.mxu0 %v1143
    %1469 = vmatprep.subr.mxu0 0.0
    %1470 = vmatpush1.msra.mxu0 %v1144
    %1471 = vmatprep.subr.mxu0 0.0
    %1472 = vmatpush1.msra.mxu0 %v1145
    %1473 = vmatprep.subr.mxu0 0.0
    %1474 = vmatpush1.msra.mxu0 %v1146
    %1475 = vmatprep.subr.mxu0 0.0
    %1476 = vmatpush1.msra.mxu0 0.0
    %1477 = vmatprep.subr.mxu0 0.0
    %1478 = vmatpush1.msra.mxu0 0.0
    %1479 = vmatprep.subr.mxu0 0.0
    %1480 = vmatpush1.msra.mxu0 0.0
    %1481 = vmatprep.subr.mxu0 0.0
    %1482 = vmatpush1.msra.mxu0 0.0
    %1483 = vmatprep.subr.mxu0 0.0
    %1484 = vmatpush1.msra.mxu0 0.0
    %1485 = vmatprep.subr.mxu0 0.0
    %1486 = vmatpush1.msra.mxu0 0.0
    %1487 = vmatprep.subr.mxu0 0.0
    %1488 = vmatpush1.msra.mxu0 0.0
    %1489 = vmatprep.subr.mxu0 0.0
    %1490 = vmatpush1.msra.mxu0 0.0
    %1491 = vmatprep.subr.mxu0 0.0
    %1492 = vmatpush1.msra.mxu0 0.0
    %1493 = vmatprep.subr.mxu0 0.0
    %1494 = vmatpush1.msra.mxu0 0.0
    %1495 = vmatprep.subr.mxu0 0.0
    %1496 = vmatpush1.msra.mxu0 0.0
    %1497 = vmatprep.subr.mxu0 0.0
    %1498 = vmatpush1.msra.mxu0 0.0
    %1499 = vmatprep.subr.mxu0 0.0
    %1500 = vmatpush1.msra.mxu0 0.0
    %1501 = vmatprep.subr.mxu0 0.0
    %1502 = vmatpush1.msra.mxu0 0.0
    %1503 = vmatprep.subr.mxu0 0.0
    %1504 = vmatpush1.msra.mxu0 0.0
    %1505 = vmatprep.subr.mxu0 0.0
    %1506 = vmatpush1.msra.mxu0 0.0
    %1507 = vmatprep.mubr.f32.mxu0 0.0
    %1508 = vmatmul.mubr.f32.gmra.mrb[0].mxu0 %v1440
    %v1509 = vpop.f32.mrb[0].mxu0
    %v1510 = vadd.f32 0.0, %v1509
    %v1511 = vpop.f32.mrb[0].mxu0
    %1512 = vdwg.mxu0
    %v1513 = vadd.f32 %v1442, %v1510
    %v1514 = vtanh.pop %v1513
    %s1515 = scalar_lea.vmem [#allocation3], 40
    %v1516 = vld [vmem:[%s1515] sm:$0xff]
    %1517 = vmatprep.subr.mxu0 0.0
    %1518 = vmatpush1.msra.mxu0 %v1131
    %1519 = vmatprep.subr.mxu0 0.0
    %1520 = vmatpush1.msra.mxu0 %v1132
    %1521 = vmatprep.subr.mxu0 0.0
    %1522 = vmatpush1.msra.mxu0 %v1133
    %1523 = vmatprep.subr.mxu0 0.0
    %1524 = vmatpush1.msra.mxu0 %v1134
    %1525 = vmatprep.subr.mxu0 0.0
    %1526 = vmatpush1.msra.mxu0 %v1135
    %1527 = vmatprep.subr.mxu0 0.0
    %1528 = vmatpush1.msra.mxu0 %v1136
    %1529 = vmatprep.subr.mxu0 0.0
    %1530 = vmatpush1.msra.mxu0 %v1137
    %1531 = vmatprep.subr.mxu0 0.0
    %1532 = vmatpush1.msra.mxu0 %v1138
    %1533 = vmatprep.subr.mxu0 0.0
    %1534 = vmatpush1.msra.mxu0 %v1139
    %1535 = vmatprep.subr.mxu0 0.0
    %1536 = vmatpush1.msra.mxu0 %v1140
    %1537 = vmatprep.subr.mxu0 0.0
    %1538 = vmatpush1.msra.mxu0 %v1141
    %1539 = vmatprep.subr.mxu0 0.0
    %1540 = vmatpush1.msra.mxu0 %v1142
    %1541 = vmatprep.subr.mxu0 0.0
    %1542 = vmatpush1.msra.mxu0 %v1143
    %1543 = vmatprep.subr.mxu0 0.0
    %1544 = vmatpush1.msra.mxu0 %v1144
    %1545 = vmatprep.subr.mxu0 0.0
    %1546 = vmatpush1.msra.mxu0 %v1145
    %1547 = vmatprep.subr.mxu0 0.0
    %1548 = vmatpush1.msra.mxu0 %v1146
    %1549 = vmatprep.subr.mxu0 0.0
    %1550 = vmatpush1.msra.mxu0 0.0
    %1551 = vmatprep.subr.mxu0 0.0
    %1552 = vmatpush1.msra.mxu0 0.0
    %1553 = vmatprep.subr.mxu0 0.0
    %1554 = vmatpush1.msra.mxu0 0.0
    %1555 = vmatprep.subr.mxu0 0.0
    %1556 = vmatpush1.msra.mxu0 0.0
    %1557 = vmatprep.subr.mxu0 0.0
    %1558 = vmatpush1.msra.mxu0 0.0
    %1559 = vmatprep.subr.mxu0 0.0
    %1560 = vmatpush1.msra.mxu0 0.0
    %1561 = vmatprep.subr.mxu0 0.0
    %1562 = vmatpush1.msra.mxu0 0.0
    %1563 = vmatprep.subr.mxu0 0.0
    %1564 = vmatpush1.msra.mxu0 0.0
    %1565 = vmatprep.subr.mxu0 0.0
    %1566 = vmatpush1.msra.mxu0 0.0
    %1567 = vmatprep.subr.mxu0 0.0
    %1568 = vmatpush1.msra.mxu0 0.0
    %1569 = vmatprep.subr.mxu0 0.0
    %1570 = vmatpush1.msra.mxu0 0.0
    %1571 = vmatprep.subr.mxu0 0.0
    %1572 = vmatpush1.msra.mxu0 0.0
    %1573 = vmatprep.subr.mxu0 0.0
    %1574 = vmatpush1.msra.mxu0 0.0
    %1575 = vmatprep.subr.mxu0 0.0
    %1576 = vmatpush1.msra.mxu0 0.0
    %1577 = vmatprep.subr.mxu0 0.0
    %1578 = vmatpush1.msra.mxu0 0.0
    %1579 = vmatprep.subr.mxu0 0.0
    %1580 = vmatpush1.msra.mxu0 0.0
    %1581 = vmatprep.mubr.f32.mxu0 0.0
    %1582 = vmatmul.mubr.f32.gmra.mrb[0].mxu0 %v1514
    %v1583 = vpop.f32.mrb[0].mxu0
    %v1584 = vadd.f32 0.0, %v1583
    %v1585 = vpop.f32.mrb[0].mxu0
    %1586 = vdwg.mxu0
    %v1587 = vadd.f32 %v1516, %v1584
    %v1588 = vtanh.pop %v1587
    %s1589 = scalar_lea.vmem [#allocation3], 48
    %v1590 = vld [vmem:[%s1589] sm:$0xff]
    %1591 = vmatprep.subr.mxu0 0.0
    %1592 = vmatpush1.msra.mxu0 %v1131
    %1593 = vmatprep.subr.mxu0 0.0
    %1594 = vmatpush1.msra.mxu0 %v1132
    %1595 = vmatprep.subr.mxu0 0.0
    %1596 = vmatpush1.msra.mxu0 %v1133
    %1597 = vmatprep.subr.mxu0 0.0
    %1598 = vmatpush1.msra.mxu0 %v1134
    %1599 = vmatprep.subr.mxu0 0.0
    %1600 = vmatpush1.msra.mxu0 %v1135
    %1601 = vmatprep.subr.mxu0 0.0
    %1602 = vmatpush1.msra.mxu0 %v1136
    %1603 = vmatprep.subr.mxu0 0.0
    %1604 = vmatpush1.msra.mxu0 %v1137
    %1605 = vmatprep.subr.mxu0 0.0
    %1606 = vmatpush1.msra.mxu0 %v1138
    %1607 = vmatprep.subr.mxu0 0.0
    %1608 = vmatpush1.msra.mxu0 %v1139
    %1609 = vmatprep.subr.mxu0 0.0
    %1610 = vmatpush1.msra.mxu0 %v1140
    %1611 = vmatprep.subr.mxu0 0.0
    %1612 = vmatpush1.msra.mxu0 %v1141
    %1613 = vmatprep.subr.mxu0 0.0
    %1614 = vmatpush1.msra.mxu0 %v1142
    %1615 = vmatprep.subr.mxu0 0.0
    %1616 = vmatpush1.msra.mxu0 %v1143
    %1617 = vmatprep.subr.mxu0 0.0
    %1618 = vmatpush1.msra.mxu0 %v1144
    %1619 = vmatprep.subr.mxu0 0.0
    %1620 = vmatpush1.msra.mxu0 %v1145
    %1621 = vmatprep.subr.mxu0 0.0
    %1622 = vmatpush1.msra.mxu0 %v1146
    %1623 = vmatprep.subr.mxu0 0.0
    %1624 = vmatpush1.msra.mxu0 0.0
    %1625 = vmatprep.subr.mxu0 0.0
    %1626 = vmatpush1.msra.mxu0 0.0
    %1627 = vmatprep.subr.mxu0 0.0
    %1628 = vmatpush1.msra.mxu0 0.0
    %1629 = vmatprep.subr.mxu0 0.0
    %1630 = vmatpush1.msra.mxu0 0.0
    %1631 = vmatprep.subr.mxu0 0.0
    %1632 = vmatpush1.msra.mxu0 0.0
    %1633 = vmatprep.subr.mxu0 0.0
    %1634 = vmatpush1.msra.mxu0 0.0
    %1635 = vmatprep.subr.mxu0 0.0
    %1636 = vmatpush1.msra.mxu0 0.0
    %1637 = vmatprep.subr.mxu0 0.0
    %1638 = vmatpush1.msra.mxu0 0.0
    %1639 = vmatprep.subr.mxu0 0.0
    %1640 = vmatpush1.msra.mxu0 0.0
    %1641 = vmatprep.subr.mxu0 0.0
    %1642 = vmatpush1.msra.mxu0 0.0
    %1643 = vmatprep.subr.mxu0 0.0
    %1644 = vmatpush1.msra.mxu0 0.0
    %1645 = vmatprep.subr.mxu0 0.0
    %1646 = vmatpush1.msra.mxu0 0.0
    %1647 = vmatprep.subr.mxu0 0.0
    %1648 = vmatpush1.msra.mxu0 0.0
    %1649 = vmatprep.subr.mxu0 0.0
    %1650 = vmatpush1.msra.mxu0 0.0
    %1651 = vmatprep.subr.mxu0 0.0
    %1652 = vmatpush1.msra.mxu0 0.0
    %1653 = vmatprep.subr.mxu0 0.0
    %1654 = vmatpush1.msra.mxu0 0.0
    %1655 = vmatprep.mubr.f32.mxu0 0.0
    %1656 = vmatmul.mubr.f32.gmra.mrb[0].mxu0 %v1588
    %v1657 = vpop.f32.mrb[0].mxu0
    %v1658 = vadd.f32 0.0, %v1657
    %v1659 = vpop.f32.mrb[0].mxu0
    %1660 = vdwg.mxu0
    %v1661 = vadd.f32 %v1590, %v1658
    %v1662 = vtanh.pop %v1661
    %s1663 = scalar_lea.vmem [#allocation3], 56
    %v1664 = vld [vmem:[%s1663] sm:$0xff]
    %1665 = vmatprep.subr.mxu0 0.0
    %1666 = vmatpush1.msra.mxu0 %v1131
    %1667 = vmatprep.subr.mxu0 0.0
    %1668 = vmatpush1.msra.mxu0 %v1132
    %1669 = vmatprep.subr.mxu0 0.0
    %1670 = vmatpush1.msra.mxu0 %v1133
    %1671 = vmatprep.subr.mxu0 0.0
    %1672 = vmatpush1.msra.mxu0 %v1134
    %1673 = vmatprep.subr.mxu0 0.0
    %1674 = vmatpush1.msra.mxu0 %v1135
    %1675 = vmatprep.subr.mxu0 0.0
    %1676 = vmatpush1.msra.mxu0 %v1136
    %1677 = vmatprep.subr.mxu0 0.0
    %1678 = vmatpush1.msra.mxu0 %v1137
    %1679 = vmatprep.subr.mxu0 0.0
    %1680 = vmatpush1.msra.mxu0 %v1138
    %1681 = vmatprep.subr.mxu0 0.0
    %1682 = vmatpush1.msra.mxu0 %v1139
    %1683 = vmatprep.subr.mxu0 0.0
    %1684 = vmatpush1.msra.mxu0 %v1140
    %1685 = vmatprep.subr.mxu0 0.0
    %1686 = vmatpush1.msra.mxu0 %v1141
    %1687 = vmatprep.subr.mxu0 0.0
    %1688 = vmatpush1.msra.mxu0 %v1142
    %1689 = vmatprep.subr.mxu0 0.0
    %1690 = vmatpush1.msra.mxu0 %v1143
    %1691 = vmatprep.subr.mxu0 0.0
    %1692 = vmatpush1.msra.mxu0 %v1144
    %1693 = vmatprep.subr.mxu0 0.0
    %1694 = vmatpush1.msra.mxu0 %v1145
    %1695 = vmatprep.subr.mxu0 0.0
    %1696 = vmatpush1.msra.mxu0 %v1146
    %1697 = vmatprep.subr.mxu0 0.0
    %1698 = vmatpush1.msra.mxu0 0.0
    %1699 = vmatprep.subr.mxu0 0.0
    %1700 = vmatpush1.msra.mxu0 0.0
    %1701 = vmatprep.subr.mxu0 0.0
    %1702 = vmatpush1.msra.mxu0 0.0
    %1703 = vmatprep.subr.mxu0 0.0
    %1704 = vmatpush1.msra.mxu0 0.0
    %1705 = vmatprep.subr.mxu0 0.0
    %1706 = vmatpush1.msra.mxu0 0.0
    %1707 = vmatprep.subr.mxu0 0.0
    %1708 = vmatpush1.msra.mxu0 0.0
    %1709 = vmatprep.subr.mxu0 0.0
    %1710 = vmatpush1.msra.mxu0 0.0
    %1711 = vmatprep.subr.mxu0 0.0
    %1712 = vmatpush1.msra.mxu0 0.0
    %1713 = vmatprep.subr.mxu0 0.0
    %1714 = vmatpush1.msra.mxu0 0.0
    %1715 = vmatprep.subr.mxu0 0.0
    %1716 = vmatpush1.msra.mxu0 0.0
    %1717 = vmatprep.subr.mxu0 0.0
    %1718 = vmatpush1.msra.mxu0 0.0
    %1719 = vmatprep.subr.mxu0 0.0
    %1720 = vmatpush1.msra.mxu0 0.0
    %1721 = vmatprep.subr.mxu0 0.0
    %1722 = vmatpush1.msra.mxu0 0.0
    %1723 = vmatprep.subr.mxu0 0.0
    %1724 = vmatpush1.msra.mxu0 0.0
    %1725 = vmatprep.subr.mxu0 0.0
    %1726 = vmatpush1.msra.mxu0 0.0
    %1727 = vmatprep.subr.mxu0 0.0
    %1728 = vmatpush1.msra.mxu0 0.0
    %1729 = vmatprep.mubr.f32.mxu0 0.0
    %1730 = vmatmul.mubr.f32.gmra.mrb[0].mxu0 %v1662
    %v1731 = vpop.f32.mrb[0].mxu0
    %v1732 = vadd.f32 0.0, %v1731
    %v1733 = vpop.f32.mrb[0].mxu0
    %1734 = vdwg.mxu0
    %v1735 = vadd.f32 %v1664, %v1732
    %v1736 = vtanh.pop %v1735
    %v1737 = vld [vmem:[#allocation13] sm:$0xff]
    %v1738 = vld [vmem:[#allocation13 + $0x8] sm:$0xff]
    %v1739 = vld [vmem:[#allocation13 + $0x10] sm:$0xff]
    %v1740 = vld [vmem:[#allocation13 + $0x18] sm:$0xff]
    %v1741 = vld [vmem:[#allocation13 + $0x20] sm:$0xff]
    %v1742 = vld [vmem:[#allocation13 + $0x28] sm:$0xff]
    %v1743 = vld [vmem:[#allocation13 + $0x30] sm:$0xff]
    %v1744 = vld [vmem:[#allocation13 + $0x38] sm:$0xff]
    %v1745 = vld [vmem:[#allocation13 + $0x40] sm:$0xff]
    %v1746 = vld [vmem:[#allocation13 + $0x48] sm:$0xff]
    %v1747 = vld [vmem:[#allocation13 + $0x50] sm:$0xff]
    %v1748 = vld [vmem:[#allocation13 + $0x58] sm:$0xff]
    %v1749 = vld [vmem:[#allocation13 + $0x60] sm:$0xff]
    %v1750 = vld [vmem:[#allocation13 + $0x68] sm:$0xff]
    %v1751 = vld [vmem:[#allocation13 + $0x70] sm:$0xff]
    %v1752 = vld [vmem:[#allocation13 + $0x78] sm:$0xff]
    %v1753 = vld [vmem:[%s8] sm:$0x1]
    %v1755 = vlaneseq
    %v1756 = vshrl.u32 %v1755, 7
    %v1757 = vsub.s32 0, %v1756
    %v1758 = vrot.slane %v1753, %v1757
    %1760 = vmatprep.subr.mxu0 0.0
    %1761 = vmatpush1.msra.mxu0 %v1737
    %1762 = vmatprep.subr.mxu0 0.0
    %1763 = vmatpush1.msra.mxu0 %v1738
    %1764 = vmatprep.subr.mxu0 0.0
    %1765 = vmatpush1.msra.mxu0 %v1739
    %1766 = vmatprep.subr.mxu0 0.0
    %1767 = vmatpush1.msra.mxu0 %v1740
    %1768 = vmatprep.subr.mxu0 0.0
    %1769 = vmatpush1.msra.mxu0 %v1741
    %1770 = vmatprep.subr.mxu0 0.0
    %1771 = vmatpush1.msra.mxu0 %v1742
    %1772 = vmatprep.subr.mxu0 0.0
    %1773 = vmatpush1.msra.mxu0 %v1743
    %1774 = vmatprep.subr.mxu0 0.0
    %1775 = vmatpush1.msra.mxu0 %v1744
    %1776 = vmatprep.subr.mxu0 0.0
    %1777 = vmatpush1.msra.mxu0 %v1745
    %1778 = vmatprep.subr.mxu0 0.0
    %1779 = vmatpush1.msra.mxu0 %v1746
    %1780 = vmatprep.subr.mxu0 0.0
    %1781 = vmatpush1.msra.mxu0 %v1747
    %1782 = vmatprep.subr.mxu0 0.0
    %1783 = vmatpush1.msra.mxu0 %v1748
    %1784 = vmatprep.subr.mxu0 0.0
    %1785 = vmatpush1.msra.mxu0 %v1749
    %1786 = vmatprep.subr.mxu0 0.0
    %1787 = vmatpush1.msra.mxu0 %v1750
    %1788 = vmatprep.subr.mxu0 0.0
    %1789 = vmatpush1.msra.mxu0 %v1751
    %1790 = vmatprep.subr.mxu0 0.0
    %1791 = vmatpush1.msra.mxu0 %v1752
    %1792 = vmatprep.subr.mxu0 0.0
    %1793 = vmatpush1.msra.mxu0 0.0
    %1794 = vmatprep.subr.mxu0 0.0
    %1795 = vmatpush1.msra.mxu0 0.0
    %1796 = vmatprep.subr.mxu0 0.0
    %1797 = vmatpush1.msra.mxu0 0.0
    %1798 = vmatprep.subr.mxu0 0.0
    %1799 = vmatpush1.msra.mxu0 0.0
    %1800 = vmatprep.subr.mxu0 0.0
    %1801 = vmatpush1.msra.mxu0 0.0
    %1802 = vmatprep.subr.mxu0 0.0
    %1803 = vmatpush1.msra.mxu0 0.0
    %1804 = vmatprep.subr.mxu0 0.0
    %1805 = vmatpush1.msra.mxu0 0.0
    %1806 = vmatprep.subr.mxu0 0.0
    %1807 = vmatpush1.msra.mxu0 0.0
    %1808 = vmatprep.subr.mxu0 0.0
    %1809 = vmatpush1.msra.mxu0 0.0
    %1810 = vmatprep.subr.mxu0 0.0
    %1811 = vmatpush1.msra.mxu0 0.0
    %1812 = vmatprep.subr.mxu0 0.0
    %1813 = vmatpush1.msra.mxu0 0.0
    %1814 = vmatprep.subr.mxu0 0.0
    %1815 = vmatpush1.msra.mxu0 0.0
    %1816 = vmatprep.subr.mxu0 0.0
    %1817 = vmatpush1.msra.mxu0 0.0
    %1818 = vmatprep.subr.mxu0 0.0
    %1819 = vmatpush1.msra.mxu0 0.0
    %1820 = vmatprep.subr.mxu0 0.0
    %1821 = vmatpush1.msra.mxu0 0.0
    %1822 = vmatprep.subr.mxu0 0.0
    %1823 = vmatpush1.msra.mxu0 0.0
    %1824 = vmatprep.mubr.f32.mxu0 0.0
    %1825 = vmatmul.mubr.f32.gmra.mrb[0].mxu0 %v1736
    %v1826 = vpop.f32.mrb[0].mxu0
    %v1827 = vadd.f32 %v1758, %v1826
    %v1828 = vpop.f32.mrb[0].mxu0
    %1829 = vdwg.mxu0
    %1830 = vst [vmem:[#allocation15] sm:$0xff] %v1827
    // Predicated region
    $region62: #{tpu_custom_call.1} parent=1 // pred_check
      _
    $region63: #{tpu_custom_call.1} parent=1 // pred_check_branch
      %1832 = sbr.rel (0) target = $region65
    $region64: #{tpu_custom_call.1} parent=1 // pred_region
      %s1834 = ssub.s32 128, 128
      %1835 = vsyncadd [#allocation6], %s1834
      %s1837 = sshll.u32 [#allocation15], 4
      %s1838 = int_to_ptr.vmem [resolvable:$true] %s1837
      %1840 = dma.vmem_to_hbm [thread:$0]  %s1838, 128, %s9, [#allocation6]
    $region65: #{tpu_custom_call.1} parent=1 // pred_fallthru
      _
    // Predicated region
    $region66: #{tpu_custom_call.1} parent=1 // pred_check
      _
    $region67: #{tpu_custom_call.1} parent=1 // pred_check_branch
      %1842 = sbr.rel (0) target = $region69
    $region68: #{tpu_custom_call.1} parent=1 // pred_region
      %1843 = dma.done [#allocation6], 128
    $region69: #{tpu_custom_call.1} parent=1 // pred_fallthru
      _
    %1844 = vsyncpa [#allocation5], 1
    %1845 = vsyncpa [#allocation8], 1
    %1846 = vsyncpa [#allocation11], 1
    %1847 = vsyncpa [#allocation14], 1
    %1848 = vsyncpa [#allocation6], 1

</llo_original>
